<compile_context>
chip_gen: v7x
topology: tpu7x:2x2x1
jax: 0.10.0
libtpu: 0.0.40
codegen_flags: <defaults>
</compile_context>

<pallas_src>
import functools

import jax
import jax.numpy as jnp
from jax.experimental import pallas as pl
from jax.experimental.pallas import tpu as pltpu


@functools.lru_cache(maxsize=None)
def _vmem_budget_bytes():
    """Per-generation scoped-VMEM budget: ~75% of physical, capped at 100 MiB."""
    try:
        cap = int(pltpu.get_tpu_info().vmem_capacity_bytes)
    except Exception:                       # older jax / no device info: be safe
        cap = 64 * 1024 * 1024
    return int(min((cap * 3) // 4, 100 * 1024 * 1024))


def _compiler_params(parallel):
    return pltpu.CompilerParams(
        dimension_semantics=("parallel",) if parallel else ("arbitrary",),
        vmem_limit_bytes=_vmem_budget_bytes())


# ----------------------------- fused kernel ----------------------------------


def _fused_gcn_kernel(x_ref, a_ref, wp_ref, bp_ref, wg_ref, bg_ref,
                      wm0_ref, bm0_ref, wm_ref, bm_ref, o_ref,
                      *, n_gcn_total, n_mlp_layers):
    """Entire forward pass; all operands VMEM-resident, no grid."""
    bf, f32 = jnp.bfloat16, jnp.float32
    a = a_ref[...]                                                  # (N, N) bf16
    # projection: h0 = X @ Wp + bp
    h = (jnp.dot(x_ref[...], wp_ref[...], preferred_element_type=f32)
         + bp_ref[...]).astype(bf)
    # GraphConv stack (static unroll; layer count is small)
    for l in range(n_gcn_total):
        ah = jnp.dot(a, h, preferred_element_type=f32)
        z = jnp.dot(ah.astype(bf), wg_ref[l], preferred_element_type=f32)
        z = z + bg_ref[l]
        if l < n_gcn_total - 1:
            z = jnp.maximum(z, 0.0)                 # GraphConv activation=ReLU
        h = jnp.maximum(h.astype(f32) + z, 0.0).astype(bf)   # residual + ReLU
    # SumPooling + MLP head
    hg = jnp.sum(h.astype(f32), axis=0, keepdims=True)
    hg = jnp.dot(hg.astype(bf), wm0_ref[...],
                 preferred_element_type=f32) + bm0_ref[...]
    for m in range(n_mlp_layers):
        hg = jnp.maximum(hg, 0.0)
        hg = jnp.dot(hg.astype(bf), wm_ref[m],
                     preferred_element_type=f32) + bm_ref[m]
    o_ref[...] = hg


# ----------------------------- tiled kernels ----------------------------------


def _projection_kernel(x_ref, w_ref, b_ref, o_ref):
    # h = X @ Wp + bp on one node-row tile.
    h = jnp.dot(x_ref[...], w_ref[...], preferred_element_type=jnp.float32)
    o_ref[...] = (h + b_ref[...]).astype(o_ref.dtype)


def _gcn_layer_kernel(a_ref, h_ref, w_ref, b_ref, o_ref, *, tm, inner_relu):
    # One inner GraphConv layer on one node-row tile:
    #   z = (A_hat[rows, :] @ h) @ Wg + bg ; z = relu(z) ; h_new = relu(h + z)
    i = pl.program_id(0)
    row0 = pl.multiple_of(i * tm, tm)
    ah = jnp.dot(a_ref[...], h_ref[...], preferred_element_type=jnp.float32)
    z = jnp.dot(ah.astype(jnp.bfloat16), w_ref[...],
                preferred_element_type=jnp.float32) + b_ref[...]
    if inner_relu:
        z = jnp.maximum(z, 0.0)
    # NOTE: this residual slice is only valid because h_ref's BlockSpec covers
    # the FULL h array with a constant index map (VMEM-resident block).
    h_old = h_ref[pl.ds(row0, tm), :].astype(jnp.float32)
    o_ref[...] = jnp.maximum(h_old + z, 0.0).astype(o_ref.dtype)


def _gcn_last_layer_kernel(a_ref, h_ref, w_ref, b_ref, wm0_ref, bm0_ref,
                           wm_ref, bm_ref, o_ref, acc_ref,
                           *, tm, n_mlp_layers):
    # Last GraphConv layer fused with SumPooling and the MLP head.  The final h
    # is only ever sum-pooled, so it is never written back to HBM.
    i = pl.program_id(0)
    row0 = pl.multiple_of(i * tm, tm)

    @pl.when(i == 0)
    def _():
        acc_ref[...] = jnp.zeros_like(acc_ref)

    ah = jnp.dot(a_ref[...], h_ref[...], preferred_element_type=jnp.float32)
    z = jnp.dot(ah.astype(jnp.bfloat16), w_ref[...],
                preferred_element_type=jnp.float32) + b_ref[...]   # no inner ReLU
    h_old = h_ref[pl.ds(row0, tm), :].astype(jnp.float32)
    h_new = jnp.maximum(h_old + z, 0.0).astype(jnp.bfloat16)
    # SumPooling for this row tile, accumulated in an f32 VMEM scratch.
    acc_ref[...] += jnp.sum(h_new.astype(jnp.float32), axis=0, keepdims=True)

    @pl.when(i == pl.num_programs(0) - 1)
    def _():
        bf, f32 = jnp.bfloat16, jnp.float32
        hg = acc_ref[...]
        hg = jnp.dot(hg.astype(bf), wm0_ref[...],
                     preferred_element_type=f32) + bm0_ref[...]
        for m in range(n_mlp_layers):
            hg = jnp.maximum(hg, 0.0)
            hg = jnp.dot(hg.astype(bf), wm_ref[m],
                         preferred_element_type=f32) + bm_ref[m]
        o_ref[...] = hg


# ----------------------------- wrappers ---------------------------------------


def _pick_row_tile(n_nodes, h_feats, budget):
    """Largest row tile whose working set fits the VMEM budget; prefer >= 4
    grid steps (v7x megacore / DMA-pipeline overlap) when that still allows a
    tile of at least 128 rows."""
    cands = [t for t in (512, 256, 128, 64, 32, 16, 8) if n_nodes % t == 0]
    if not cands:
        return n_nodes                                   # tiny graph: one tile

    def fits(t):
        a_tiles = 2 * t * n_nodes * 2          # double-buffered streamed A tile
        resident = n_nodes * h_feats * 2       # full h, single-buffered
        weights = h_feats * h_feats * 2 + 8 * h_feats * 4
        out = 2 * t * h_feats * 2
        return a_tiles + resident + weights + out < 0.8 * budget

    for t in cands:
        if t >= 128 and n_nodes // t >= 4 and fits(t):
            return t
    for t in cands:
        if fits(t):
            return t
    return cands[-1]


def gcn_forward_fused(x, a_hat, params, *, n_gcn_total, n_mlp_layers):
    """Whole forward in a single gridless pallas_call (working set in VMEM)."""
    wp, bp, wg, bg, wm0, bm0, wm, bm = params
    mlp_dim = wm0.shape[1]
    bf = jnp.bfloat16
    kern = functools.partial(_fused_gcn_kernel, n_gcn_total=n_gcn_total,
                             n_mlp_layers=n_mlp_layers)
    return pl.pallas_call(
        kern,
        out_shape=jax.ShapeDtypeStruct((1, mlp_dim), jnp.float32),
        compiler_params=pltpu.CompilerParams(
            vmem_limit_bytes=_vmem_budget_bytes()),
    )(x.astype(bf), a_hat.astype(bf), wp.astype(bf), bp, wg.astype(bf), bg,
      wm0.astype(bf), bm0, wm.astype(bf), bm)


def gcn_forward_tiled(x, a_hat, params, *, n_gcn_total, n_mlp_layers, tm=None,
                      single_buffer_resident=True):
    """Row-tiled path: A_hat streamed per row tile, previous-layer h resident."""
    wp, bp, wg, bg, wm0, bm0, wm, bm = params
    n_nodes, in_feats = x.shape
    h_feats = wp.shape[1]
    mlp_dim = wm0.shape[1]
    n_mlp_w = wm.shape[0]
    budget = _vmem_budget_bytes()
    if tm is None:
        tm = _pick_row_tile(n_nodes, h_feats, budget)
    # TODO(synk): instead of asserting, pad n_nodes to the tile and mask padded
    # rows in the bias-add / pooling so they never reach SumPooling.
    assert n_nodes % tm == 0, "node count must be a multiple of the row tile"
    n_tiles = n_nodes // tm

    bf = jnp.bfloat16
    xb, ab = x.astype(bf), a_hat.astype(bf)
    wpb, wgb = wp.astype(bf), wg.astype(bf)
    wm0b, wmb = wm0.astype(bf), wm.astype(bf)

    def resident(shape):
        # Constant-index block: DMAed once, never re-fetched -> single-buffer it
        # so the default second pipeline buffer doesn't waste VMEM.
        idx = lambda i: (0,) * len(shape)
        if single_buffer_resident:
            return pl.BlockSpec(shape, idx, pipeline_mode=pl.Buffered(1))
        return pl.BlockSpec(shape, idx)

    # ---- projection: h0 = X @ Wp + bp (row-tiled, megacore-parallel) ----
    h = pl.pallas_call(
        _projection_kernel,
        out_shape=jax.ShapeDtypeStruct((n_nodes, h_feats), bf),
        grid_spec=pltpu.PrefetchScalarGridSpec(
            num_scalar_prefetch=0,
            grid=(n_tiles,),
            in_specs=[pl.BlockSpec((tm, in_feats), lambda i: (i, 0)),
                      resident((in_feats, h_feats)),
                      resident((1, h_feats))],
            out_specs=pl.BlockSpec((tm, h_feats), lambda i: (i, 0))),
        compiler_params=_compiler_params(parallel=True),
    )(xb, wpb, bp)

    # ---- inner GraphConv layers (all but the last) ----
    # TODO(synk): for graphs where full-h residency blows VMEM, add a
    # node-contraction grid axis (A tiled (tm, tk), h tiled (tk, h_feats)) and
    # accumulate A_tile @ h_tile into an f32 VMEM scratch.
    for l in range(n_gcn_total - 1):
        kern = functools.partial(_gcn_layer_kernel, tm=tm, inner_relu=True)
        h = pl.pallas_call(
            kern,
            out_shape=jax.ShapeDtypeStruct((n_nodes, h_feats), bf),
            grid_spec=pltpu.PrefetchScalarGridSpec(
                num_scalar_prefetch=0,
                grid=(n_tiles,),
                in_specs=[
                    # streamed row tile of the normalized adjacency; bump to
                    # pl.Buffered(3) if profiling shows exposed DMA waits.
                    pl.BlockSpec((tm, n_nodes), lambda i: (i, 0)),
                    resident((n_nodes, h_feats)),       # full previous-layer h
                    resident((h_feats, h_feats)),
                    resident((1, h_feats)),
                ],
                out_specs=pl.BlockSpec((tm, h_feats), lambda i: (i, 0))),
            compiler_params=_compiler_params(parallel=True),
        )(ab, h, wgb[l], bg[l])

    # ---- last GraphConv layer fused with SumPooling + MLP head ----
    # (sequential grid: cross-tile f32 accumulator scratch)
    kern = functools.partial(_gcn_last_layer_kernel, tm=tm,
                             n_mlp_layers=n_mlp_layers)
    out = pl.pallas_call(
        kern,
        out_shape=jax.ShapeDtypeStruct((1, mlp_dim), jnp.float32),
        grid_spec=pltpu.PrefetchScalarGridSpec(
            num_scalar_prefetch=0,
            grid=(n_tiles,),
            in_specs=[
                pl.BlockSpec((tm, n_nodes), lambda i: (i, 0)),
                resident((n_nodes, h_feats)),
                resident((h_feats, h_feats)),
                resident((1, h_feats)),
                resident((h_feats, mlp_dim)),
                resident((1, mlp_dim)),
                resident((n_mlp_w, mlp_dim, mlp_dim)),
                resident((n_mlp_w, 1, mlp_dim)),
            ],
            out_specs=pl.BlockSpec((1, mlp_dim), lambda i: (0, 0)),
            scratch_shapes=[pltpu.VMEM((1, h_feats), jnp.float32)]),
        compiler_params=_compiler_params(parallel=False),
    )(ab, h, wgb[n_gcn_total - 1], bg[n_gcn_total - 1], wm0b, bm0, wmb, bm)
    return out


def gcn_forward(x, a_hat, params, *, n_gcn_total, n_mlp_layers, tm=None,
                fused=None, single_buffer_resident=True):
    """Auto-dispatch: fully-fused single kernel when the working set fits the
    per-generation VMEM budget, otherwise the row-tiled streaming path."""
    if fused is None:
        wp, _, wg, _, wm0, _, wm, _ = params
        n_nodes, in_feats = x.shape
        h_feats, mlp_dim = wp.shape[1], wm0.shape[1]
        ws = (n_nodes * n_nodes * 2 + n_nodes * in_feats * 2
              + 3 * n_nodes * h_feats * 4
              + (in_feats * h_feats + wg.shape[0] * h_feats * h_feats
                 + h_feats * mlp_dim + wm.shape[0] * mlp_dim * mlp_dim) * 2)
        fused = ws <= _vmem_budget_bytes() // 2
    if fused:
        return gcn_forward_fused(x, a_hat, params, n_gcn_total=n_gcn_total,
                                 n_mlp_layers=n_mlp_layers)
    return gcn_forward_tiled(x, a_hat, params, n_gcn_total=n_gcn_total,
                             n_mlp_layers=n_mlp_layers, tm=tm,
                             single_buffer_resident=single_buffer_resident)


# ------------------------- pure-JAX reference --------------------------------


def gcn_reference(x, a_hat, params, *, n_gcn_total, n_mlp_layers):
    """Same math & mixed-precision flow as the kernels, in plain jnp."""
    wp, bp, wg, bg, wm0, bm0, wm, bm = params
    bf, f32 = jnp.bfloat16, jnp.float32
    xb, ab = x.astype(bf), a_hat.astype(bf)
    h = (jnp.dot(xb, wp.astype(bf), preferred_element_type=f32) + bp).astype(bf)
    for l in range(n_gcn_total):
        ah = jnp.dot(ab, h, preferred_element_type=f32)
        z = jnp.dot(ah.astype(bf), wg[l].astype(bf),
                    preferred_element_type=f32) + bg[l]
        if l < n_gcn_total - 1:
            z = jnp.maximum(z, 0.0)
        h = jnp.maximum(h.astype(f32) + z, 0.0).astype(bf)
    hg = jnp.sum(h.astype(f32), axis=0, keepdims=True)
    hg = jnp.dot(hg.astype(bf), wm0.astype(bf), preferred_element_type=f32) + bm0
    for m in range(n_mlp_layers):
        hg = jnp.maximum(hg, 0.0)
        hg = jnp.dot(hg.astype(bf), wm[m].astype(bf),
                     preferred_element_type=f32) + bm[m]
    return hg


# --------------------------- test scaffolding ---------------------------------


def _uniform(key, shape, scale):
    return jax.random.uniform(key, shape, jnp.float32, -scale, scale)


def make_params(key, in_feats, h_feats, mlp_dim, n_gcn_total, n_mlp_layers):
    keys = jax.random.split(key, 8)
    wp = _uniform(keys[0], (in_feats, h_feats), 1.0 / jnp.sqrt(in_feats))
    bp = _uniform(keys[1], (1, h_feats), 1.0 / jnp.sqrt(in_feats))
    wg = _uniform(keys[2], (n_gcn_total, h_feats, h_feats), 1.0 / jnp.sqrt(h_feats))
    bg = _uniform(keys[3], (n_gcn_total, 1, h_feats), 1.0 / jnp.sqrt(h_feats))
    wm0 = _uniform(keys[4], (h_feats, mlp_dim), 1.0 / jnp.sqrt(h_feats))
    bm0 = _uniform(keys[5], (1, mlp_dim), 1.0 / jnp.sqrt(h_feats))
    wm = _uniform(keys[6], (max(n_mlp_layers, 1), mlp_dim, mlp_dim),
                  1.0 / jnp.sqrt(mlp_dim))
    bm = _uniform(keys[7], (max(n_mlp_layers, 1), 1, mlp_dim),
                  1.0 / jnp.sqrt(mlp_dim))
    return (wp, bp, wg, bg, wm0, bm0, wm, bm)


def make_graph(key, n_nodes):
    """Random undirected graph with self-loops -> D^-1/2 (A+I) D^-1/2."""
    a = (jax.random.uniform(key, (n_nodes, n_nodes)) < 0.4).astype(jnp.float32)
    a = jnp.maximum(a, a.T)
    a = jnp.maximum(a, jnp.eye(n_nodes))
    deg = jnp.sum(a, axis=1)
    d_inv_sqrt = 1.0 / jnp.sqrt(deg)
    return a * d_inv_sqrt[:, None] * d_inv_sqrt[None, :]


if __name__ == "__main__":
    in_feats = h_feats = mlp_dim = 128          # lane-dense feature dims
    n_gcn_layers = 2        # module builds n_gcn_layers + 1 GraphConv layers
    n_mlp_layers = 2
    n_gcn_total = n_gcn_layers + 1
    key = jax.random.PRNGKey(0)

    def run_case(n_nodes, *, fused, single_buffer_resident=True):
        k_x, k_g, k_p = jax.random.split(jax.random.fold_in(key, n_nodes), 3)
        x = jax.random.normal(k_x, (n_nodes, in_feats), jnp.float32)
        a_hat = make_graph(k_g, n_nodes)
        params = make_params(k_p, in_feats, h_feats, mlp_dim, n_gcn_total,
                             n_mlp_layers)
        fwd = jax.jit(functools.partial(
            gcn_forward, n_gcn_total=n_gcn_total, n_mlp_layers=n_mlp_layers,
            fused=fused, single_buffer_resident=single_buffer_resident))
        out = jax.block_until_ready(fwd(x, a_hat, params))
        ref = jax.block_until_ready(gcn_reference(
            x, a_hat, params, n_gcn_total=n_gcn_total,
            n_mlp_layers=n_mlp_layers))
        assert out.shape == (1, mlp_dim), out.shape
        err = float(jnp.max(jnp.abs(out - ref)) / (jnp.max(jnp.abs(ref)) + 1e-6))
        assert err < 2e-2, f"mismatch vs reference (n_nodes={n_nodes}): {err}"

    # 1) small graph (test-harness size): auto-dispatch -> fully-fused kernel.
    run_case(128, fused=None)

    # 2) larger graph: row-tiled streaming path (tm auto -> 256, 4 row tiles).
    try:
        run_case(1024, fused=False)
    except Exception:
        # pl.Buffered(1) single-buffering of constant-index blocks is a recent
        # Pallas feature; fall back to default double buffering if rejected.
        run_case(1024, fused=False, single_buffer_resident=False)

    print("KERNEL_OK")
</pallas_src>

<mosaic_0001>
module attributes {stable_mosaic.version = 11 : i64} {
  func.func @_fused_gcn_kernel(%arg0: memref<128x128xbf16, #tpu.memory_space<vmem>>, %arg1: memref<128x128xbf16, #tpu.memory_space<vmem>>, %arg2: memref<128x128xbf16, #tpu.memory_space<vmem>>, %arg3: memref<1x128xf32, #tpu.memory_space<vmem>>, %arg4: memref<3x128x128xbf16, #tpu.memory_space<vmem>>, %arg5: memref<3x1x128xf32, #tpu.memory_space<vmem>>, %arg6: memref<128x128xbf16, #tpu.memory_space<vmem>>, %arg7: memref<1x128xf32, #tpu.memory_space<vmem>>, %arg8: memref<2x128x128xbf16, #tpu.memory_space<vmem>>, %arg9: memref<2x1x128xf32, #tpu.memory_space<vmem>>, %arg10: memref<1x128xf32, #tpu.memory_space<vmem>>) attributes {dimension_semantics = [], scalar_prefetch = 0 : i64, scratch_operands = 0 : i64, tpu.core_type = #tpu.core_type<tc>} {
    %c0 = arith.constant 0 : index
    %c0_0 = arith.constant 0 : index
    %0 = vector.load %arg1[%c0, %c0_0] : memref<128x128xbf16, #tpu.memory_space<vmem>>, vector<128x128xbf16>
    %c0_1 = arith.constant 0 : index
    %c0_2 = arith.constant 0 : index
    %1 = vector.load %arg0[%c0_1, %c0_2] : memref<128x128xbf16, #tpu.memory_space<vmem>>, vector<128x128xbf16>
    %c0_3 = arith.constant 0 : index
    %c0_4 = arith.constant 0 : index
    %2 = vector.load %arg2[%c0_3, %c0_4] : memref<128x128xbf16, #tpu.memory_space<vmem>>, vector<128x128xbf16>
    %cst = arith.constant dense<0.000000e+00> : vector<128x128xf32>
    %3 = tpu.matmul %1, %2, %cst {dimension_numbers = #tpu.dot_dimension_numbers<[1], [0], [0], [1], [0, 0, 1, 1], [], []>} : vector<128x128xbf16>, vector<128x128xbf16>, vector<128x128xf32> -> vector<128x128xf32>
    %c0_5 = arith.constant 0 : index
    %c0_6 = arith.constant 0 : index
    %4 = vector.load %arg3[%c0_5, %c0_6] : memref<1x128xf32, #tpu.memory_space<vmem>>, vector<1x128xf32>
    %5 = vector.broadcast %4 : vector<1x128xf32> to vector<128x128xf32>
    %6 = arith.addf %3, %5 : vector<128x128xf32>
    %7 = arith.truncf %6 : vector<128x128xf32> to vector<128x128xbf16>
    %cst_7 = arith.constant dense<0.000000e+00> : vector<128x128xf32>
    %8 = tpu.matmul %0, %7, %cst_7 {dimension_numbers = #tpu.dot_dimension_numbers<[1], [0], [0], [1], [0, 0, 1, 1], [], []>} : vector<128x128xbf16>, vector<128x128xbf16>, vector<128x128xf32> -> vector<128x128xf32>
    %9 = arith.truncf %8 : vector<128x128xf32> to vector<128x128xbf16>
    %c0_8 = arith.constant 0 : index
    %c0_9 = arith.constant 0 : index
    %c0_10 = arith.constant 0 : index
    %10 = vector.load %arg4[%c0_8, %c0_9, %c0_10] : memref<3x128x128xbf16, #tpu.memory_space<vmem>>, vector<1x128x128xbf16>
    %11 = vector.shape_cast %10 : vector<1x128x128xbf16> to vector<128x128xbf16>
    %cst_11 = arith.constant dense<0.000000e+00> : vector<128x128xf32>
    %12 = tpu.matmul %9, %11, %cst_11 {dimension_numbers = #tpu.dot_dimension_numbers<[1], [0], [0], [1], [0, 0, 1, 1], [], []>} : vector<128x128xbf16>, vector<128x128xbf16>, vector<128x128xf32> -> vector<128x128xf32>
    %c0_12 = arith.constant 0 : index
    %c0_13 = arith.constant 0 : index
    %c0_14 = arith.constant 0 : index
    %13 = vector.load %arg5[%c0_12, %c0_13, %c0_14] : memref<3x1x128xf32, #tpu.memory_space<vmem>>, vector<1x1x128xf32>
    %14 = vector.shape_cast %13 : vector<1x1x128xf32> to vector<1x128xf32>
    %15 = vector.broadcast %14 : vector<1x128xf32> to vector<128x128xf32>
    %16 = arith.addf %12, %15 : vector<128x128xf32>
    %cst_15 = arith.constant 0.000000e+00 : f32
    %17 = vector.broadcast %cst_15 : f32 to vector<128x128xf32>
    %18 = arith.maximumf %16, %17 : vector<128x128xf32>
    %19 = arith.extf %7 : vector<128x128xbf16> to vector<128x128xf32>
    %20 = arith.addf %19, %18 : vector<128x128xf32>
    %cst_16 = arith.constant 0.000000e+00 : f32
    %21 = vector.broadcast %cst_16 : f32 to vector<128x128xf32>
    %22 = arith.maximumf %20, %21 : vector<128x128xf32>
    %23 = arith.truncf %22 : vector<128x128xf32> to vector<128x128xbf16>
    %cst_17 = arith.constant dense<0.000000e+00> : vector<128x128xf32>
    %24 = tpu.matmul %0, %23, %cst_17 {dimension_numbers = #tpu.dot_dimension_numbers<[1], [0], [0], [1], [0, 0, 1, 1], [], []>} : vector<128x128xbf16>, vector<128x128xbf16>, vector<128x128xf32> -> vector<128x128xf32>
    %25 = arith.truncf %24 : vector<128x128xf32> to vector<128x128xbf16>
    %c1 = arith.constant 1 : index
    %c0_18 = arith.constant 0 : index
    %c0_19 = arith.constant 0 : index
    %26 = vector.load %arg4[%c1, %c0_18, %c0_19] : memref<3x128x128xbf16, #tpu.memory_space<vmem>>, vector<1x128x128xbf16>
    %27 = vector.shape_cast %26 : vector<1x128x128xbf16> to vector<128x128xbf16>
    %cst_20 = arith.constant dense<0.000000e+00> : vector<128x128xf32>
    %28 = tpu.matmul %25, %27, %cst_20 {dimension_numbers = #tpu.dot_dimension_numbers<[1], [0], [0], [1], [0, 0, 1, 1], [], []>} : vector<128x128xbf16>, vector<128x128xbf16>, vector<128x128xf32> -> vector<128x128xf32>
    %c1_21 = arith.constant 1 : index
    %c0_22 = arith.constant 0 : index
    %c0_23 = arith.constant 0 : index
    %29 = vector.load %arg5[%c1_21, %c0_22, %c0_23] : memref<3x1x128xf32, #tpu.memory_space<vmem>>, vector<1x1x128xf32>
    %30 = vector.shape_cast %29 : vector<1x1x128xf32> to vector<1x128xf32>
    %31 = vector.broadcast %30 : vector<1x128xf32> to vector<128x128xf32>
    %32 = arith.addf %28, %31 : vector<128x128xf32>
    %cst_24 = arith.constant 0.000000e+00 : f32
    %33 = vector.broadcast %cst_24 : f32 to vector<128x128xf32>
    %34 = arith.maximumf %32, %33 : vector<128x128xf32>
    %35 = arith.extf %23 : vector<128x128xbf16> to vector<128x128xf32>
    %36 = arith.addf %35, %34 : vector<128x128xf32>
    %cst_25 = arith.constant 0.000000e+00 : f32
    %37 = vector.broadcast %cst_25 : f32 to vector<128x128xf32>
    %38 = arith.maximumf %36, %37 : vector<128x128xf32>
    %39 = arith.truncf %38 : vector<128x128xf32> to vector<128x128xbf16>
    %cst_26 = arith.constant dense<0.000000e+00> : vector<128x128xf32>
    %40 = tpu.matmul %0, %39, %cst_26 {dimension_numbers = #tpu.dot_dimension_numbers<[1], [0], [0], [1], [0, 0, 1, 1], [], []>} : vector<128x128xbf16>, vector<128x128xbf16>, vector<128x128xf32> -> vector<128x128xf32>
    %41 = arith.truncf %40 : vector<128x128xf32> to vector<128x128xbf16>
    %c2 = arith.constant 2 : index
    %c0_27 = arith.constant 0 : index
    %c0_28 = arith.constant 0 : index
    %42 = vector.load %arg4[%c2, %c0_27, %c0_28] : memref<3x128x128xbf16, #tpu.memory_space<vmem>>, vector<1x128x128xbf16>
    %43 = vector.shape_cast %42 : vector<1x128x128xbf16> to vector<128x128xbf16>
    %cst_29 = arith.constant dense<0.000000e+00> : vector<128x128xf32>
    %44 = tpu.matmul %41, %43, %cst_29 {dimension_numbers = #tpu.dot_dimension_numbers<[1], [0], [0], [1], [0, 0, 1, 1], [], []>} : vector<128x128xbf16>, vector<128x128xbf16>, vector<128x128xf32> -> vector<128x128xf32>
    %c2_30 = arith.constant 2 : index
    %c0_31 = arith.constant 0 : index
    %c0_32 = arith.constant 0 : index
    %45 = vector.load %arg5[%c2_30, %c0_31, %c0_32] : memref<3x1x128xf32, #tpu.memory_space<vmem>>, vector<1x1x128xf32>
    %46 = vector.shape_cast %45 : vector<1x1x128xf32> to vector<1x128xf32>
    %47 = vector.broadcast %46 : vector<1x128xf32> to vector<128x128xf32>
    %48 = arith.addf %44, %47 : vector<128x128xf32>
    %49 = arith.extf %39 : vector<128x128xbf16> to vector<128x128xf32>
    %50 = arith.addf %49, %48 : vector<128x128xf32>
    %cst_33 = arith.constant 0.000000e+00 : f32
    %51 = vector.broadcast %cst_33 : f32 to vector<128x128xf32>
    %52 = arith.maximumf %50, %51 : vector<128x128xf32>
    %53 = arith.truncf %52 : vector<128x128xf32> to vector<128x128xbf16>
    %54 = arith.extf %53 : vector<128x128xbf16> to vector<128x128xf32>
    %cst_34 = arith.constant dense<0.000000e+00> : vector<128xf32>
    %55 = vector.multi_reduction <add>, %54, %cst_34 [0] : vector<128x128xf32> to vector<128xf32>
    %56 = vector.shape_cast %55 : vector<128xf32> to vector<1x128xf32>
    %57 = arith.truncf %56 : vector<1x128xf32> to vector<1x128xbf16>
    %c0_35 = arith.constant 0 : index
    %c0_36 = arith.constant 0 : index
    %58 = vector.load %arg6[%c0_35, %c0_36] : memref<128x128xbf16, #tpu.memory_space<vmem>>, vector<128x128xbf16>
    %cst_37 = arith.constant dense<0.000000e+00> : vector<1x128xf32>
    %59 = tpu.matmul %57, %58, %cst_37 {dimension_numbers = #tpu.dot_dimension_numbers<[1], [0], [0], [1], [0, 0, 1, 1], [], []>} : vector<1x128xbf16>, vector<128x128xbf16>, vector<1x128xf32> -> vector<1x128xf32>
    %c0_38 = arith.constant 0 : index
    %c0_39 = arith.constant 0 : index
    %60 = vector.load %arg7[%c0_38, %c0_39] : memref<1x128xf32, #tpu.memory_space<vmem>>, vector<1x128xf32>
    %61 = arith.addf %59, %60 : vector<1x128xf32>
    %cst_40 = arith.constant 0.000000e+00 : f32
    %62 = vector.broadcast %cst_40 : f32 to vector<1x128xf32>
    %63 = arith.maximumf %61, %62 : vector<1x128xf32>
    %64 = arith.truncf %63 : vector<1x128xf32> to vector<1x128xbf16>
    %c0_41 = arith.constant 0 : index
    %c0_42 = arith.constant 0 : index
    %c0_43 = arith.constant 0 : index
    %65 = vector.load %arg8[%c0_41, %c0_42, %c0_43] : memref<2x128x128xbf16, #tpu.memory_space<vmem>>, vector<1x128x128xbf16>
    %66 = vector.shape_cast %65 : vector<1x128x128xbf16> to vector<128x128xbf16>
    %cst_44 = arith.constant dense<0.000000e+00> : vector<1x128xf32>
    %67 = tpu.matmul %64, %66, %cst_44 {dimension_numbers = #tpu.dot_dimension_numbers<[1], [0], [0], [1], [0, 0, 1, 1], [], []>} : vector<1x128xbf16>, vector<128x128xbf16>, vector<1x128xf32> -> vector<1x128xf32>
    %c0_45 = arith.constant 0 : index
    %c0_46 = arith.constant 0 : index
    %c0_47 = arith.constant 0 : index
    %68 = vector.load %arg9[%c0_45, %c0_46, %c0_47] : memref<2x1x128xf32, #tpu.memory_space<vmem>>, vector<1x1x128xf32>
    %69 = vector.shape_cast %68 : vector<1x1x128xf32> to vector<1x128xf32>
    %70 = arith.addf %67, %69 : vector<1x128xf32>
    %cst_48 = arith.constant 0.000000e+00 : f32
    %71 = vector.broadcast %cst_48 : f32 to vector<1x128xf32>
    %72 = arith.maximumf %70, %71 : vector<1x128xf32>
    %73 = arith.truncf %72 : vector<1x128xf32> to vector<1x128xbf16>
    %c1_49 = arith.constant 1 : index
    %c0_50 = arith.constant 0 : index
    %c0_51 = arith.constant 0 : index
    %74 = vector.load %arg8[%c1_49, %c0_50, %c0_51] : memref<2x128x128xbf16, #tpu.memory_space<vmem>>, vector<1x128x128xbf16>
    %75 = vector.shape_cast %74 : vector<1x128x128xbf16> to vector<128x128xbf16>
    %cst_52 = arith.constant dense<0.000000e+00> : vector<1x128xf32>
    %76 = tpu.matmul %73, %75, %cst_52 {dimension_numbers = #tpu.dot_dimension_numbers<[1], [0], [0], [1], [0, 0, 1, 1], [], []>} : vector<1x128xbf16>, vector<128x128xbf16>, vector<1x128xf32> -> vector<1x128xf32>
    %c1_53 = arith.constant 1 : index
    %c0_54 = arith.constant 0 : index
    %c0_55 = arith.constant 0 : index
    %77 = vector.load %arg9[%c1_53, %c0_54, %c0_55] : memref<2x1x128xf32, #tpu.memory_space<vmem>>, vector<1x1x128xf32>
    %78 = vector.shape_cast %77 : vector<1x1x128xf32> to vector<1x128xf32>
    %79 = arith.addf %76, %78 : vector<1x128xf32>
    %c0_56 = arith.constant 0 : index
    %c0_57 = arith.constant 0 : index
    %80 = vector.load %arg10[%c0_56, %c0_57] : memref<1x128xf32, #tpu.memory_space<vmem>>, vector<1x128xf32>
    tpu.vector_store %arg10[%c0_56, %c0_57], %79 {strides = array<i32>} : memref<1x128xf32, #tpu.memory_space<vmem>>, vector<1x128xf32>,
    return
  }
}

</mosaic_0001>

<llo_original>
// kernel: gcn_forward.1
$region0: #{gcn_forward.1}
  #allocation0 [shape = 'u32[]', space=smem, size = 0x4, offset = 0x4, fixed_abs, tag = 'smem constant byte address 0x4 - core index']
  #allocation1 [shape = 'u32[144,128]{1,0:T(1,128)}', space=vmem, size = 0x12000, scoped, tag = 'internal scratch']
  %s0 = inlined_call_operand.vmem [shape: bf16[128,128], index: 0, kind: input, shape index: {}]
  %s1 = inlined_call_operand.vmem [shape: bf16[128,128], index: 1, kind: input, shape index: {}]
  %s2 = inlined_call_operand.vmem [shape: bf16[128,128], index: 2, kind: input, shape index: {}]
  %s3 = inlined_call_operand.vmem [shape: f32[1,128], index: 3, kind: input, shape index: {}]
  %s4 = inlined_call_operand.vmem [shape: bf16[3,128,128], index: 4, kind: input, shape index: {}]
  %s5 = inlined_call_operand.vmem [shape: f32[3,1,128], index: 5, kind: input, shape index: {}]
  %s6 = inlined_call_operand.vmem [shape: bf16[128,128], index: 6, kind: input, shape index: {}]
  %s7 = inlined_call_operand.vmem [shape: f32[1,128], index: 7, kind: input, shape index: {}]
  %s8 = inlined_call_operand.vmem [shape: bf16[2,128,128], index: 8, kind: input, shape index: {}]
  %s9 = inlined_call_operand.vmem [shape: f32[2,1,128], index: 9, kind: input, shape index: {}]
  %s10 = inlined_call_operand.hbm [shape: f32[1,128], index: 10, kind: output, shape index: {}]
  %s11 = sld [smem:[#allocation0]]
  $region50: #{gcn_forward.1} parent=0
    _
  %s13 = ssub.s32 1, %s11
  %s14 = scalar_select 0, %s13, %s11
  $region1: #{gcn_forward.1} parent=0
    #allocation2 [shape = 'u8[512]{0}', space=vmem, size = 0x400, scoped, tag = 'output window, operand 0, single buffered']
    #allocation3 [shape = 's32[1]{0}', space=sflag, size = 0x4, scoped, tag = 'scoped memory for gcn_forward.1']
    %15 = vsyncpa [#allocation3], 0
    // Predicated region
    $region2: #{gcn_forward.1} parent=1 // pred_check
      _
    $region3: #{gcn_forward.1} parent=1 // pred_check_branch
      %17 = sbr.rel (0) target = $region5
    $region4: #{gcn_forward.1} parent=1 // pred_region
      _
    $region5: #{gcn_forward.1} parent=1 // pred_fallthru
      _
    // Predicated region
    $region6: #{gcn_forward.1} parent=1 // pred_check
      _
    $region7: #{gcn_forward.1} parent=1 // pred_check_branch
      %19 = sbr.rel (0) target = $region9
    $region8: #{gcn_forward.1} parent=1 // pred_region
      _
    $region9: #{gcn_forward.1} parent=1 // pred_fallthru
      _
    // Predicated region
    $region10: #{gcn_forward.1} parent=1 // pred_check
      _
    $region11: #{gcn_forward.1} parent=1 // pred_check_branch
      %21 = sbr.rel (0) target = $region13
    $region12: #{gcn_forward.1} parent=1 // pred_region
      _
    $region13: #{gcn_forward.1} parent=1 // pred_fallthru
      _
    // Predicated region
    $region14: #{gcn_forward.1} parent=1 // pred_check
      _
    $region15: #{gcn_forward.1} parent=1 // pred_check_branch
      %23 = sbr.rel (0) target = $region17
    $region16: #{gcn_forward.1} parent=1 // pred_region
      _
    $region17: #{gcn_forward.1} parent=1 // pred_fallthru
      _
    // Predicated region
    $region18: #{gcn_forward.1} parent=1 // pred_check
      _
    $region19: #{gcn_forward.1} parent=1 // pred_check_branch
      %25 = sbr.rel (0) target = $region21
    $region20: #{gcn_forward.1} parent=1 // pred_region
      _
    $region21: #{gcn_forward.1} parent=1 // pred_fallthru
      _
    // Predicated region
    $region22: #{gcn_forward.1} parent=1 // pred_check
      _
    $region23: #{gcn_forward.1} parent=1 // pred_check_branch
      %27 = sbr.rel (0) target = $region25
    $region24: #{gcn_forward.1} parent=1 // pred_region
      _
    $region25: #{gcn_forward.1} parent=1 // pred_fallthru
      _
    // Predicated region
    $region26: #{gcn_forward.1} parent=1 // pred_check
      _
    $region27: #{gcn_forward.1} parent=1 // pred_check_branch
      %29 = sbr.rel (0) target = $region29
    $region28: #{gcn_forward.1} parent=1 // pred_region
      _
    $region29: #{gcn_forward.1} parent=1 // pred_fallthru
      _
    // Predicated region
    $region30: #{gcn_forward.1} parent=1 // pred_check
      _
    $region31: #{gcn_forward.1} parent=1 // pred_check_branch
      %31 = sbr.rel (0) target = $region33
    $region32: #{gcn_forward.1} parent=1 // pred_region
      _
    $region33: #{gcn_forward.1} parent=1 // pred_fallthru
      _
    // Predicated region
    $region34: #{gcn_forward.1} parent=1 // pred_check
      _
    $region35: #{gcn_forward.1} parent=1 // pred_check_branch
      %33 = sbr.rel (0) target = $region37
    $region36: #{gcn_forward.1} parent=1 // pred_region
      _
    $region37: #{gcn_forward.1} parent=1 // pred_fallthru
      _
    // Predicated region
    $region38: #{gcn_forward.1} parent=1 // pred_check
      _
    $region39: #{gcn_forward.1} parent=1 // pred_check_branch
      %35 = sbr.rel (0) target = $region41
    $region40: #{gcn_forward.1} parent=1 // pred_region
      _
    $region41: #{gcn_forward.1} parent=1 // pred_fallthru
      _
    %v37 = vld [vmem:[%s1] sm:$0xf]
    %v38 = vld [vmem:[%s1 + $0x4] sm:$0xf]
    %v39 = vld [vmem:[%s1 + $0x8] sm:$0xf]
    %v40 = vld [vmem:[%s1 + $0xc] sm:$0xf]
    %v41 = vld [vmem:[%s1 + $0x10] sm:$0xf]
    %v42 = vld [vmem:[%s1 + $0x14] sm:$0xf]
    %v43 = vld [vmem:[%s1 + $0x18] sm:$0xf]
    %v44 = vld [vmem:[%s1 + $0x1c] sm:$0xf]
    %v45 = vld [vmem:[%s1 + $0x20] sm:$0xf]
    %v46 = vld [vmem:[%s1 + $0x24] sm:$0xf]
    %v47 = vld [vmem:[%s1 + $0x28] sm:$0xf]
    %v48 = vld [vmem:[%s1 + $0x2c] sm:$0xf]
    %v49 = vld [vmem:[%s1 + $0x30] sm:$0xf]
    %v50 = vld [vmem:[%s1 + $0x34] sm:$0xf]
    %v51 = vld [vmem:[%s1 + $0x38] sm:$0xf]
    %v52 = vld [vmem:[%s1 + $0x3c] sm:$0xf]
    %v53 = vld [vmem:[%s0] sm:$0xf]
    %v54 = vld [vmem:[%s0 + $0x4] sm:$0xf]
    %v55 = vld [vmem:[%s0 + $0x8] sm:$0xf]
    %v56 = vld [vmem:[%s0 + $0xc] sm:$0xf]
    %v57 = vld [vmem:[%s0 + $0x10] sm:$0xf]
    %v58 = vld [vmem:[%s0 + $0x14] sm:$0xf]
    %v59 = vld [vmem:[%s0 + $0x18] sm:$0xf]
    %v60 = vld [vmem:[%s0 + $0x1c] sm:$0xf]
    %v61 = vld [vmem:[%s0 + $0x20] sm:$0xf]
    %v62 = vld [vmem:[%s0 + $0x24] sm:$0xf]
    %v63 = vld [vmem:[%s0 + $0x28] sm:$0xf]
    %v64 = vld [vmem:[%s0 + $0x2c] sm:$0xf]
    %v65 = vld [vmem:[%s0 + $0x30] sm:$0xf]
    %v66 = vld [vmem:[%s0 + $0x34] sm:$0xf]
    %v67 = vld [vmem:[%s0 + $0x38] sm:$0xf]
    %v68 = vld [vmem:[%s0 + $0x3c] sm:$0xf]
    %v69 = vld [vmem:[%s2] sm:$0xf]
    %v70 = vld [vmem:[%s2 + $0x4] sm:$0xf]
    %v71 = vld [vmem:[%s2 + $0x8] sm:$0xf]
    %v72 = vld [vmem:[%s2 + $0xc] sm:$0xf]
    %v73 = vld [vmem:[%s2 + $0x10] sm:$0xf]
    %v74 = vld [vmem:[%s2 + $0x14] sm:$0xf]
    %v75 = vld [vmem:[%s2 + $0x18] sm:$0xf]
    %v76 = vld [vmem:[%s2 + $0x1c] sm:$0xf]
    %v77 = vld [vmem:[%s2 + $0x20] sm:$0xf]
    %v78 = vld [vmem:[%s2 + $0x24] sm:$0xf]
    %v79 = vld [vmem:[%s2 + $0x28] sm:$0xf]
    %v80 = vld [vmem:[%s2 + $0x2c] sm:$0xf]
    %v81 = vld [vmem:[%s2 + $0x30] sm:$0xf]
    %v82 = vld [vmem:[%s2 + $0x34] sm:$0xf]
    %v83 = vld [vmem:[%s2 + $0x38] sm:$0xf]
    %v84 = vld [vmem:[%s2 + $0x3c] sm:$0xf]
    %v85 = vld [vmem:[%s3] sm:$0x1]
    %v87 = vlaneseq
    %v88 = vshrl.u32 %v87, 7
    %v89 = vsub.s32 0, %v88
    %v90 = vrot.slane %v85, %v89
    %v108 = vunpack.c.l.b16 %v53
    %v109 = vunpack.c.l.b16 %v54
    %v110 = vunpack.c.l.b16 %v55
    %v111 = vunpack.c.l.b16 %v56
    %v112 = vunpack.c.l.b16 %v57
    %v113 = vunpack.c.l.b16 %v58
    %v114 = vunpack.c.l.b16 %v59
    %v115 = vunpack.c.l.b16 %v60
    %v116 = vunpack.c.l.b16 %v61
    %v117 = vunpack.c.l.b16 %v62
    %v118 = vunpack.c.l.b16 %v63
    %v119 = vunpack.c.l.b16 %v64
    %v120 = vunpack.c.l.b16 %v65
    %v121 = vunpack.c.l.b16 %v66
    %v122 = vunpack.c.l.b16 %v67
    %v123 = vunpack.c.l.b16 %v68
    %v124 = vpack.c.b16 %v109, %v108
    %v125 = vpack.c.b16 %v111, %v110
    %v126 = vpack.c.b16 %v113, %v112
    %v127 = vpack.c.b16 %v115, %v114
    %v128 = vpack.c.b16 %v117, %v116
    %v129 = vpack.c.b16 %v119, %v118
    %v130 = vpack.c.b16 %v121, %v120
    %v131 = vpack.c.b16 %v123, %v122
    %v156 = vunpack.c.l.b16 %v69
    %v157 = vunpack.c.l.b16 %v70
    %v158 = vunpack.c.l.b16 %v71
    %v159 = vunpack.c.l.b16 %v72
    %v160 = vunpack.c.l.b16 %v73
    %v161 = vunpack.c.l.b16 %v74
    %v162 = vunpack.c.l.b16 %v75
    %v163 = vunpack.c.l.b16 %v76
    %v164 = vunpack.c.l.b16 %v77
    %v165 = vunpack.c.l.b16 %v78
    %v166 = vunpack.c.l.b16 %v79
    %v167 = vunpack.c.l.b16 %v80
    %v168 = vunpack.c.l.b16 %v81
    %v169 = vunpack.c.l.b16 %v82
    %v170 = vunpack.c.l.b16 %v83
    %v171 = vunpack.c.l.b16 %v84
    %v172 = vpack.c.b16 %v157, %v156
    %v173 = vpack.c.b16 %v159, %v158
    %v174 = vpack.c.b16 %v161, %v160
    %v175 = vpack.c.b16 %v163, %v162
    %v176 = vpack.c.b16 %v165, %v164
    %v177 = vpack.c.b16 %v167, %v166
    %v178 = vpack.c.b16 %v169, %v168
    %v179 = vpack.c.b16 %v171, %v170
    %188 = vmatprep.subr.bf16.mxu0 0
    %189 = vmatpush1.bf16.msra.mxu0 %v172
    %190 = vmatprep.subr.bf16.mxu0 0
    %191 = vmatpush1.bf16.msra.mxu0 %v173
    %192 = vmatprep.subr.bf16.mxu0 0
    %193 = vmatpush1.bf16.msra.mxu0 %v174
    %194 = vmatprep.subr.bf16.mxu0 0
    %195 = vmatpush1.bf16.msra.mxu0 %v175
    %196 = vmatprep.subr.bf16.mxu0 0
    %197 = vmatpush1.bf16.msra.mxu0 %v176
    %198 = vmatprep.subr.bf16.mxu0 0
    %199 = vmatpush1.bf16.msra.mxu0 %v177
    %200 = vmatprep.subr.bf16.mxu0 0
    %201 = vmatpush1.bf16.msra.mxu0 %v178
    %202 = vmatprep.subr.bf16.mxu0 0
    %203 = vmatpush1.bf16.msra.mxu0 %v179
    %204 = vmatprep.subr.bf16.mxu0 0
    %205 = vmatpush1.bf16.msra.mxu0 0
    %206 = vmatprep.subr.bf16.mxu0 0
    %207 = vmatpush1.bf16.msra.mxu0 0
    %208 = vmatprep.subr.bf16.mxu0 0
    %209 = vmatpush1.bf16.msra.mxu0 0
    %210 = vmatprep.subr.bf16.mxu0 0
    %211 = vmatpush1.bf16.msra.mxu0 0
    %212 = vmatprep.subr.bf16.mxu0 0
    %213 = vmatpush1.bf16.msra.mxu0 0
    %214 = vmatprep.subr.bf16.mxu0 0
    %215 = vmatpush1.bf16.msra.mxu0 0
    %216 = vmatprep.subr.bf16.mxu0 0
    %217 = vmatpush1.bf16.msra.mxu0 0
    %218 = vmatprep.subr.bf16.mxu0 0
    %219 = vmatpush1.bf16.msra.mxu0 0
    %220 = vmatprep.mubr.bf16.mxu0 0
    %221 = vmatmul.mubr.bf16.gmra.mrb[0].mxu0 %v124
    %v222 = vpop.f32.mrb[0].mxu0
    %v223 = vadd.f32 %v90, %v222
    %v224 = vpop.f32.mrb[0].mxu0
    %v225 = vpop.f32.mrb[0].mxu0
    %v226 = vadd.f32 %v90, %v225
    %v227 = vpop.f32.mrb[0].mxu0
    %228 = vmatprep.mubr.bf16.mxu0 0
    %229 = vmatmul.mubr.bf16.gmra.mrb[0].mxu0 %v125
    %v230 = vpop.f32.mrb[0].mxu0
    %v231 = vadd.f32 %v90, %v230
    %v232 = vpop.f32.mrb[0].mxu0
    %v233 = vpop.f32.mrb[0].mxu0
    %v234 = vadd.f32 %v90, %v233
    %v235 = vpop.f32.mrb[0].mxu0
    %236 = vmatprep.mubr.bf16.mxu0 0
    %237 = vmatmul.mubr.bf16.gmra.mrb[0].mxu0 %v126
    %v238 = vpop.f32.mrb[0].mxu0
    %v239 = vadd.f32 %v90, %v238
    %v240 = vpop.f32.mrb[0].mxu0
    %v241 = vpop.f32.mrb[0].mxu0
    %v242 = vadd.f32 %v90, %v241
    %v243 = vpop.f32.mrb[0].mxu0
    %244 = vmatprep.mubr.bf16.mxu0 0
    %245 = vmatmul.mubr.bf16.gmra.mrb[0].mxu0 %v127
    %v246 = vpop.f32.mrb[0].mxu0
    %v247 = vadd.f32 %v90, %v246
    %v248 = vpop.f32.mrb[0].mxu0
    %v249 = vpop.f32.mrb[0].mxu0
    %v250 = vadd.f32 %v90, %v249
    %v251 = vpop.f32.mrb[0].mxu0
    %252 = vmatprep.mubr.bf16.mxu0 0
    %253 = vmatmul.mubr.bf16.gmra.mrb[0].mxu0 %v128
    %v254 = vpop.f32.mrb[0].mxu0
    %v255 = vadd.f32 %v90, %v254
    %v256 = vpop.f32.mrb[0].mxu0
    %v257 = vpop.f32.mrb[0].mxu0
    %v258 = vadd.f32 %v90, %v257
    %v259 = vpop.f32.mrb[0].mxu0
    %260 = vmatprep.mubr.bf16.mxu0 0
    %261 = vmatmul.mubr.bf16.gmra.mrb[0].mxu0 %v129
    %v262 = vpop.f32.mrb[0].mxu0
    %v263 = vadd.f32 %v90, %v262
    %v264 = vpop.f32.mrb[0].mxu0
    %v265 = vpop.f32.mrb[0].mxu0
    %v266 = vadd.f32 %v90, %v265
    %v267 = vpop.f32.mrb[0].mxu0
    %268 = vmatprep.mubr.bf16.mxu0 0
    %269 = vmatmul.mubr.bf16.gmra.mrb[0].mxu0 %v130
    %v270 = vpop.f32.mrb[0].mxu0
    %v271 = vadd.f32 %v90, %v270
    %v272 = vpop.f32.mrb[0].mxu0
    %v273 = vpop.f32.mrb[0].mxu0
    %v274 = vadd.f32 %v90, %v273
    %v275 = vpop.f32.mrb[0].mxu0
    %276 = vmatprep.mubr.bf16.mxu0 0
    %277 = vmatmul.mubr.bf16.gmra.mrb[0].mxu0 %v131
    %v278 = vpop.f32.mrb[0].mxu0
    %v279 = vadd.f32 %v90, %v278
    %v280 = vpop.f32.mrb[0].mxu0
    %v281 = vpop.f32.mrb[0].mxu0
    %v282 = vadd.f32 %v90, %v281
    %v283 = vpop.f32.mrb[0].mxu0
    %284 = vdwg.mxu0
    %v285 = vpack.c.bf16 %v226, %v223
    %v286 = vpack.c.bf16 %v234, %v231
    %v287 = vpack.c.bf16 %v242, %v239
    %v288 = vpack.c.bf16 %v250, %v247
    %v289 = vpack.c.bf16 %v258, %v255
    %v290 = vpack.c.bf16 %v266, %v263
    %v291 = vpack.c.bf16 %v274, %v271
    %v292 = vpack.c.bf16 %v282, %v279
    %v309 = vunpack.c.l.b16 %v37
    %v310 = vunpack.c.l.b16 %v38
    %v311 = vunpack.c.l.b16 %v39
    %v312 = vunpack.c.l.b16 %v40
    %v313 = vunpack.c.l.b16 %v41
    %v314 = vunpack.c.l.b16 %v42
    %v315 = vunpack.c.l.b16 %v43
    %v316 = vunpack.c.l.b16 %v44
    %v317 = vunpack.c.l.b16 %v45
    %v318 = vunpack.c.l.b16 %v46
    %v319 = vunpack.c.l.b16 %v47
    %v320 = vunpack.c.l.b16 %v48
    %v321 = vunpack.c.l.b16 %v49
    %v322 = vunpack.c.l.b16 %v50
    %v323 = vunpack.c.l.b16 %v51
    %v324 = vunpack.c.l.b16 %v52
    %v325 = vpack.c.b16 %v310, %v309
    %v326 = vpack.c.b16 %v312, %v311
    %v327 = vpack.c.b16 %v314, %v313
    %v328 = vpack.c.b16 %v316, %v315
    %v329 = vpack.c.b16 %v318, %v317
    %v330 = vpack.c.b16 %v320, %v319
    %v331 = vpack.c.b16 %v322, %v321
    %v332 = vpack.c.b16 %v324, %v323
    %341 = vmatprep.subr.bf16.mxu0 0
    %342 = vmatpush1.bf16.msra.mxu0 %v285
    %343 = vmatprep.subr.bf16.mxu0 0
    %344 = vmatpush1.bf16.msra.mxu0 %v286
    %345 = vmatprep.subr.bf16.mxu0 0
    %346 = vmatpush1.bf16.msra.mxu0 %v287
    %347 = vmatprep.subr.bf16.mxu0 0
    %348 = vmatpush1.bf16.msra.mxu0 %v288
    %349 = vmatprep.subr.bf16.mxu0 0
    %350 = vmatpush1.bf16.msra.mxu0 %v289
    %351 = vmatprep.subr.bf16.mxu0 0
    %352 = vmatpush1.bf16.msra.mxu0 %v290
    %353 = vmatprep.subr.bf16.mxu0 0
    %354 = vmatpush1.bf16.msra.mxu0 %v291
    %355 = vmatprep.subr.bf16.mxu0 0
    %356 = vmatpush1.bf16.msra.mxu0 %v292
    %357 = vmatprep.subr.bf16.mxu0 0
    %358 = vmatpush1.bf16.msra.mxu0 0
    %359 = vmatprep.subr.bf16.mxu0 0
    %360 = vmatpush1.bf16.msra.mxu0 0
    %361 = vmatprep.subr.bf16.mxu0 0
    %362 = vmatpush1.bf16.msra.mxu0 0
    %363 = vmatprep.subr.bf16.mxu0 0
    %364 = vmatpush1.bf16.msra.mxu0 0
    %365 = vmatprep.subr.bf16.mxu0 0
    %366 = vmatpush1.bf16.msra.mxu0 0
    %367 = vmatprep.subr.bf16.mxu0 0
    %368 = vmatpush1.bf16.msra.mxu0 0
    %369 = vmatprep.subr.bf16.mxu0 0
    %370 = vmatpush1.bf16.msra.mxu0 0
    %371 = vmatprep.subr.bf16.mxu0 0
    %372 = vmatpush1.bf16.msra.mxu0 0
    %373 = vmatprep.mubr.bf16.mxu0 0
    %374 = vmatmul.mubr.bf16.gmra.mrb[0].mxu0 %v325
    %v375 = vpop.f32.mrb[0].mxu0
    %v376 = vadd.f32 0.0, %v375
    %v377 = vpop.f32.mrb[0].mxu0
    %v378 = vpop.f32.mrb[0].mxu0
    %v379 = vadd.f32 0.0, %v378
    %v380 = vpop.f32.mrb[0].mxu0
    %381 = vmatprep.mubr.bf16.mxu0 0
    %382 = vmatmul.mubr.bf16.gmra.mrb[0].mxu0 %v326
    %v383 = vpop.f32.mrb[0].mxu0
    %v384 = vadd.f32 0.0, %v383
    %v385 = vpop.f32.mrb[0].mxu0
    %v386 = vpop.f32.mrb[0].mxu0
    %v387 = vadd.f32 0.0, %v386
    %v388 = vpop.f32.mrb[0].mxu0
    %389 = vmatprep.mubr.bf16.mxu0 0
    %390 = vmatmul.mubr.bf16.gmra.mrb[0].mxu0 %v327
    %v391 = vpop.f32.mrb[0].mxu0
    %v392 = vadd.f32 0.0, %v391
    %v393 = vpop.f32.mrb[0].mxu0
    %v394 = vpop.f32.mrb[0].mxu0
    %v395 = vadd.f32 0.0, %v394
    %v396 = vpop.f32.mrb[0].mxu0
    %397 = vmatprep.mubr.bf16.mxu0 0
    %398 = vmatmul.mubr.bf16.gmra.mrb[0].mxu0 %v328
    %v399 = vpop.f32.mrb[0].mxu0
    %v400 = vadd.f32 0.0, %v399
    %v401 = vpop.f32.mrb[0].mxu0
    %v402 = vpop.f32.mrb[0].mxu0
    %v403 = vadd.f32 0.0, %v402
    %v404 = vpop.f32.mrb[0].mxu0
    %405 = vmatprep.mubr.bf16.mxu0 0
    %406 = vmatmul.mubr.bf16.gmra.mrb[0].mxu0 %v329
    %v407 = vpop.f32.mrb[0].mxu0
    %v408 = vadd.f32 0.0, %v407
    %v409 = vpop.f32.mrb[0].mxu0
    %v410 = vpop.f32.mrb[0].mxu0
    %v411 = vadd.f32 0.0, %v410
    %v412 = vpop.f32.mrb[0].mxu0
    %413 = vmatprep.mubr.bf16.mxu0 0
    %414 = vmatmul.mubr.bf16.gmra.mrb[0].mxu0 %v330
    %v415 = vpop.f32.mrb[0].mxu0
    %v416 = vadd.f32 0.0, %v415
    %v417 = vpop.f32.mrb[0].mxu0
    %v418 = vpop.f32.mrb[0].mxu0
    %v419 = vadd.f32 0.0, %v418
    %v420 = vpop.f32.mrb[0].mxu0
    %421 = vmatprep.mubr.bf16.mxu0 0
    %422 = vmatmul.mubr.bf16.gmra.mrb[0].mxu0 %v331
    %v423 = vpop.f32.mrb[0].mxu0
    %v424 = vadd.f32 0.0, %v423
    %v425 = vpop.f32.mrb[0].mxu0
    %v426 = vpop.f32.mrb[0].mxu0
    %v427 = vadd.f32 0.0, %v426
    %v428 = vpop.f32.mrb[0].mxu0
    %429 = vmatprep.mubr.bf16.mxu0 0
    %430 = vmatmul.mubr.bf16.gmra.mrb[0].mxu0 %v332
    %v431 = vpop.f32.mrb[0].mxu0
    %v432 = vadd.f32 0.0, %v431
    %v433 = vpop.f32.mrb[0].mxu0
    %v434 = vpop.f32.mrb[0].mxu0
    %v435 = vadd.f32 0.0, %v434
    %v436 = vpop.f32.mrb[0].mxu0
    %437 = vdwg.mxu0
    %v438 = vpack.c.bf16 %v379, %v376
    %v439 = vpack.c.bf16 %v387, %v384
    %v440 = vpack.c.bf16 %v395, %v392
    %v441 = vpack.c.bf16 %v403, %v400
    %v442 = vpack.c.bf16 %v411, %v408
    %v443 = vpack.c.bf16 %v419, %v416
    %v444 = vpack.c.bf16 %v427, %v424
    %v445 = vpack.c.bf16 %v435, %v432
    %v446 = vld [vmem:[%s4] sm:$0xf]
    %v447 = vld [vmem:[%s4 + $0x4] sm:$0xf]
    %v448 = vld [vmem:[%s4 + $0x8] sm:$0xf]
    %v449 = vld [vmem:[%s4 + $0xc] sm:$0xf]
    %v450 = vld [vmem:[%s4 + $0x10] sm:$0xf]
    %v451 = vld [vmem:[%s4 + $0x14] sm:$0xf]
    %v452 = vld [vmem:[%s4 + $0x18] sm:$0xf]
    %v453 = vld [vmem:[%s4 + $0x1c] sm:$0xf]
    %v454 = vld [vmem:[%s4 + $0x20] sm:$0xf]
    %v455 = vld [vmem:[%s4 + $0x24] sm:$0xf]
    %v456 = vld [vmem:[%s4 + $0x28] sm:$0xf]
    %v457 = vld [vmem:[%s4 + $0x2c] sm:$0xf]
    %v458 = vld [vmem:[%s4 + $0x30] sm:$0xf]
    %v459 = vld [vmem:[%s4 + $0x34] sm:$0xf]
    %v460 = vld [vmem:[%s4 + $0x38] sm:$0xf]
    %v461 = vld [vmem:[%s4 + $0x3c] sm:$0xf]
    %v462 = vld [vmem:[%s5] sm:$0x1]
    %v464 = vlaneseq
    %v465 = vshrl.u32 %v464, 7
    %v466 = vsub.s32 0, %v465
    %v467 = vrot.slane %v462, %v466
    %v485 = vunpack.c.l.b16 %v446
    %v486 = vunpack.c.l.b16 %v447
    %v487 = vunpack.c.l.b16 %v448
    %v488 = vunpack.c.l.b16 %v449
    %v489 = vunpack.c.l.b16 %v450
    %v490 = vunpack.c.l.b16 %v451
    %v491 = vunpack.c.l.b16 %v452
    %v492 = vunpack.c.l.b16 %v453
    %v493 = vunpack.c.l.b16 %v454
    %v494 = vunpack.c.l.b16 %v455
    %v495 = vunpack.c.l.b16 %v456
    %v496 = vunpack.c.l.b16 %v457
    %v497 = vunpack.c.l.b16 %v458
    %v498 = vunpack.c.l.b16 %v459
    %v499 = vunpack.c.l.b16 %v460
    %v500 = vunpack.c.l.b16 %v461
    %v501 = vpack.c.b16 %v486, %v485
    %v502 = vpack.c.b16 %v488, %v487
    %v503 = vpack.c.b16 %v490, %v489
    %v504 = vpack.c.b16 %v492, %v491
    %v505 = vpack.c.b16 %v494, %v493
    %v506 = vpack.c.b16 %v496, %v495
    %v507 = vpack.c.b16 %v498, %v497
    %v508 = vpack.c.b16 %v500, %v499
    %517 = vmatprep.subr.bf16.mxu0 0
    %518 = vmatpush1.bf16.msra.mxu0 %v501
    %519 = vmatprep.subr.bf16.mxu0 0
    %520 = vmatpush1.bf16.msra.mxu0 %v502
    %521 = vmatprep.subr.bf16.mxu0 0
    %522 = vmatpush1.bf16.msra.mxu0 %v503
    %523 = vmatprep.subr.bf16.mxu0 0
    %524 = vmatpush1.bf16.msra.mxu0 %v504
    %525 = vmatprep.subr.bf16.mxu0 0
    %526 = vmatpush1.bf16.msra.mxu0 %v505
    %527 = vmatprep.subr.bf16.mxu0 0
    %528 = vmatpush1.bf16.msra.mxu0 %v506
    %529 = vmatprep.subr.bf16.mxu0 0
    %530 = vmatpush1.bf16.msra.mxu0 %v507
    %531 = vmatprep.subr.bf16.mxu0 0
    %532 = vmatpush1.bf16.msra.mxu0 %v508
    %533 = vmatprep.subr.bf16.mxu0 0
    %534 = vmatpush1.bf16.msra.mxu0 0
    %535 = vmatprep.subr.bf16.mxu0 0
    %536 = vmatpush1.bf16.msra.mxu0 0
    %537 = vmatprep.subr.bf16.mxu0 0
    %538 = vmatpush1.bf16.msra.mxu0 0
    %539 = vmatprep.subr.bf16.mxu0 0
    %540 = vmatpush1.bf16.msra.mxu0 0
    %541 = vmatprep.subr.bf16.mxu0 0
    %542 = vmatpush1.bf16.msra.mxu0 0
    %543 = vmatprep.subr.bf16.mxu0 0
    %544 = vmatpush1.bf16.msra.mxu0 0
    %545 = vmatprep.subr.bf16.mxu0 0
    %546 = vmatpush1.bf16.msra.mxu0 0
    %547 = vmatprep.subr.bf16.mxu0 0
    %548 = vmatpush1.bf16.msra.mxu0 0
    %549 = vmatprep.mubr.bf16.mxu0 0
    %550 = vmatmul.mubr.bf16.gmra.mrb[0].mxu0 %v438
    %v551 = vpop.f32.mrb[0].mxu0
    %v552 = vadd.f32 %v467, %v551
    %v553 = vpop.f32.mrb[0].mxu0
    %v554 = vpop.f32.mrb[0].mxu0
    %v555 = vadd.f32 %v467, %v554
    %v556 = vpop.f32.mrb[0].mxu0
    %557 = vmatprep.mubr.bf16.mxu0 0
    %558 = vmatmul.mubr.bf16.gmra.mrb[0].mxu0 %v439
    %v559 = vpop.f32.mrb[0].mxu0
    %v560 = vadd.f32 %v467, %v559
    %v561 = vpop.f32.mrb[0].mxu0
    %v562 = vpop.f32.mrb[0].mxu0
    %v563 = vadd.f32 %v467, %v562
    %v564 = vpop.f32.mrb[0].mxu0
    %565 = vmatprep.mubr.bf16.mxu0 0
    %566 = vmatmul.mubr.bf16.gmra.mrb[0].mxu0 %v440
    %v567 = vpop.f32.mrb[0].mxu0
    %v568 = vadd.f32 %v467, %v567
    %v569 = vpop.f32.mrb[0].mxu0
    %v570 = vpop.f32.mrb[0].mxu0
    %v571 = vadd.f32 %v467, %v570
    %v572 = vpop.f32.mrb[0].mxu0
    %573 = vmatprep.mubr.bf16.mxu0 0
    %574 = vmatmul.mubr.bf16.gmra.mrb[0].mxu0 %v441
    %v575 = vpop.f32.mrb[0].mxu0
    %v576 = vadd.f32 %v467, %v575
    %v577 = vpop.f32.mrb[0].mxu0
    %v578 = vpop.f32.mrb[0].mxu0
    %v579 = vadd.f32 %v467, %v578
    %v580 = vpop.f32.mrb[0].mxu0
    %581 = vmatprep.mubr.bf16.mxu0 0
    %582 = vmatmul.mubr.bf16.gmra.mrb[0].mxu0 %v442
    %v583 = vpop.f32.mrb[0].mxu0
    %v584 = vadd.f32 %v467, %v583
    %v585 = vpop.f32.mrb[0].mxu0
    %v586 = vpop.f32.mrb[0].mxu0
    %v587 = vadd.f32 %v467, %v586
    %v588 = vpop.f32.mrb[0].mxu0
    %589 = vmatprep.mubr.bf16.mxu0 0
    %590 = vmatmul.mubr.bf16.gmra.mrb[0].mxu0 %v443
    %v591 = vpop.f32.mrb[0].mxu0
    %v592 = vadd.f32 %v467, %v591
    %v593 = vpop.f32.mrb[0].mxu0
    %v594 = vpop.f32.mrb[0].mxu0
    %v595 = vadd.f32 %v467, %v594
    %v596 = vpop.f32.mrb[0].mxu0
    %597 = vmatprep.mubr.bf16.mxu0 0
    %598 = vmatmul.mubr.bf16.gmra.mrb[0].mxu0 %v444
    %v599 = vpop.f32.mrb[0].mxu0
    %v600 = vadd.f32 %v467, %v599
    %v601 = vpop.f32.mrb[0].mxu0
    %v602 = vpop.f32.mrb[0].mxu0
    %v603 = vadd.f32 %v467, %v602
    %v604 = vpop.f32.mrb[0].mxu0
    %605 = vmatprep.mubr.bf16.mxu0 0
    %606 = vmatmul.mubr.bf16.gmra.mrb[0].mxu0 %v445
    %v607 = vpop.f32.mrb[0].mxu0
    %v608 = vadd.f32 %v467, %v607
    %v609 = vpop.f32.mrb[0].mxu0
    %v610 = vpop.f32.mrb[0].mxu0
    %v611 = vadd.f32 %v467, %v610
    %v612 = vpop.f32.mrb[0].mxu0
    %613 = vdwg.mxu0
    %v614 = vmax.f32 %v552, 0.0
    %v615 = vmax.f32 %v555, 0.0
    %v616 = vmax.f32 %v560, 0.0
    %v617 = vmax.f32 %v563, 0.0
    %v618 = vmax.f32 %v568, 0.0
    %v619 = vmax.f32 %v571, 0.0
    %v620 = vmax.f32 %v576, 0.0
    %v621 = vmax.f32 %v579, 0.0
    %v622 = vmax.f32 %v584, 0.0
    %v623 = vmax.f32 %v587, 0.0
    %v624 = vmax.f32 %v592, 0.0
    %v625 = vmax.f32 %v595, 0.0
    %v626 = vmax.f32 %v600, 0.0
    %v627 = vmax.f32 %v603, 0.0
    %v628 = vmax.f32 %v608, 0.0
    %v629 = vmax.f32 %v611, 0.0
    %v630 = vunpack.c.l.bf16 %v285
    %v631 = vunpack.c.h.bf16 %v285
    %v632 = vunpack.c.l.bf16 %v286
    %v633 = vunpack.c.h.bf16 %v286
    %v634 = vunpack.c.l.bf16 %v287
    %v635 = vunpack.c.h.bf16 %v287
    %v636 = vunpack.c.l.bf16 %v288
    %v637 = vunpack.c.h.bf16 %v288
    %v638 = vunpack.c.l.bf16 %v289
    %v639 = vunpack.c.h.bf16 %v289
    %v640 = vunpack.c.l.bf16 %v290
    %v641 = vunpack.c.h.bf16 %v290
    %v642 = vunpack.c.l.bf16 %v291
    %v643 = vunpack.c.h.bf16 %v291
    %v644 = vunpack.c.l.bf16 %v292
    %v645 = vunpack.c.h.bf16 %v292
    %v646 = vadd.f32 %v630, %v614
    %v647 = vadd.f32 %v631, %v615
    %v648 = vadd.f32 %v632, %v616
    %v649 = vadd.f32 %v633, %v617
    %v650 = vadd.f32 %v634, %v618
    %v651 = vadd.f32 %v635, %v619
    %v652 = vadd.f32 %v636, %v620
    %v653 = vadd.f32 %v637, %v621
    %v654 = vadd.f32 %v638, %v622
    %v655 = vadd.f32 %v639, %v623
    %v656 = vadd.f32 %v640, %v624
    %v657 = vadd.f32 %v641, %v625
    %v658 = vadd.f32 %v642, %v626
    %v659 = vadd.f32 %v643, %v627
    %v660 = vadd.f32 %v644, %v628
    %v661 = vadd.f32 %v645, %v629
    %v662 = vmax.f32 %v646, 0.0
    %v663 = vmax.f32 %v647, 0.0
    %v664 = vmax.f32 %v648, 0.0
    %v665 = vmax.f32 %v649, 0.0
    %v666 = vmax.f32 %v650, 0.0
    %v667 = vmax.f32 %v651, 0.0
    %v668 = vmax.f32 %v652, 0.0
    %v669 = vmax.f32 %v653, 0.0
    %v670 = vmax.f32 %v654, 0.0
    %v671 = vmax.f32 %v655, 0.0
    %v672 = vmax.f32 %v656, 0.0
    %v673 = vmax.f32 %v657, 0.0
    %v674 = vmax.f32 %v658, 0.0
    %v675 = vmax.f32 %v659, 0.0
    %v676 = vmax.f32 %v660, 0.0
    %v677 = vmax.f32 %v661, 0.0
    %v678 = vpack.c.bf16 %v663, %v662
    %v679 = vpack.c.bf16 %v665, %v664
    %v680 = vpack.c.bf16 %v667, %v666
    %v681 = vpack.c.bf16 %v669, %v668
    %v682 = vpack.c.bf16 %v671, %v670
    %v683 = vpack.c.bf16 %v673, %v672
    %v684 = vpack.c.bf16 %v675, %v674
    %v685 = vpack.c.bf16 %v677, %v676
    %686 = vmatprep.subr.bf16.mxu0 0
    %687 = vmatpush1.bf16.msra.mxu0 %v678
    %688 = vmatprep.subr.bf16.mxu0 0
    %689 = vmatpush1.bf16.msra.mxu0 %v679
    %690 = vmatprep.subr.bf16.mxu0 0
    %691 = vmatpush1.bf16.msra.mxu0 %v680
    %692 = vmatprep.subr.bf16.mxu0 0
    %693 = vmatpush1.bf16.msra.mxu0 %v681
    %694 = vmatprep.subr.bf16.mxu0 0
    %695 = vmatpush1.bf16.msra.mxu0 %v682
    %696 = vmatprep.subr.bf16.mxu0 0
    %697 = vmatpush1.bf16.msra.mxu0 %v683
    %698 = vmatprep.subr.bf16.mxu0 0
    %699 = vmatpush1.bf16.msra.mxu0 %v684
    %700 = vmatprep.subr.bf16.mxu0 0
    %701 = vmatpush1.bf16.msra.mxu0 %v685
    %702 = vmatprep.subr.bf16.mxu0 0
    %703 = vmatpush1.bf16.msra.mxu0 0
    %704 = vmatprep.subr.bf16.mxu0 0
    %705 = vmatpush1.bf16.msra.mxu0 0
    %706 = vmatprep.subr.bf16.mxu0 0
    %707 = vmatpush1.bf16.msra.mxu0 0
    %708 = vmatprep.subr.bf16.mxu0 0
    %709 = vmatpush1.bf16.msra.mxu0 0
    %710 = vmatprep.subr.bf16.mxu0 0
    %711 = vmatpush1.bf16.msra.mxu0 0
    %712 = vmatprep.subr.bf16.mxu0 0
    %713 = vmatpush1.bf16.msra.mxu0 0
    %714 = vmatprep.subr.bf16.mxu0 0
    %715 = vmatpush1.bf16.msra.mxu0 0
    %716 = vmatprep.subr.bf16.mxu0 0
    %717 = vmatpush1.bf16.msra.mxu0 0
    %718 = vmatprep.mubr.bf16.mxu0 0
    %719 = vmatmul.mubr.bf16.gmra.mrb[0].mxu0 %v325
    %v720 = vpop.f32.mrb[0].mxu0
    %v721 = vadd.f32 0.0, %v720
    %v722 = vpop.f32.mrb[0].mxu0
    %v723 = vpop.f32.mrb[0].mxu0
    %v724 = vadd.f32 0.0, %v723
    %v725 = vpop.f32.mrb[0].mxu0
    %726 = vmatprep.mubr.bf16.mxu0 0
    %727 = vmatmul.mubr.bf16.gmra.mrb[0].mxu0 %v326
    %v728 = vpop.f32.mrb[0].mxu0
    %v729 = vadd.f32 0.0, %v728
    %v730 = vpop.f32.mrb[0].mxu0
    %v731 = vpop.f32.mrb[0].mxu0
    %v732 = vadd.f32 0.0, %v731
    %v733 = vpop.f32.mrb[0].mxu0
    %734 = vmatprep.mubr.bf16.mxu0 0
    %735 = vmatmul.mubr.bf16.gmra.mrb[0].mxu0 %v327
    %v736 = vpop.f32.mrb[0].mxu0
    %v737 = vadd.f32 0.0, %v736
    %v738 = vpop.f32.mrb[0].mxu0
    %v739 = vpop.f32.mrb[0].mxu0
    %v740 = vadd.f32 0.0, %v739
    %v741 = vpop.f32.mrb[0].mxu0
    %742 = vmatprep.mubr.bf16.mxu0 0
    %743 = vmatmul.mubr.bf16.gmra.mrb[0].mxu0 %v328
    %v744 = vpop.f32.mrb[0].mxu0
    %v745 = vadd.f32 0.0, %v744
    %v746 = vpop.f32.mrb[0].mxu0
    %v747 = vpop.f32.mrb[0].mxu0
    %v748 = vadd.f32 0.0, %v747
    %v749 = vpop.f32.mrb[0].mxu0
    %750 = vmatprep.mubr.bf16.mxu0 0
    %751 = vmatmul.mubr.bf16.gmra.mrb[0].mxu0 %v329
    %v752 = vpop.f32.mrb[0].mxu0
    %v753 = vadd.f32 0.0, %v752
    %v754 = vpop.f32.mrb[0].mxu0
    %v755 = vpop.f32.mrb[0].mxu0
    %v756 = vadd.f32 0.0, %v755
    %v757 = vpop.f32.mrb[0].mxu0
    %758 = vmatprep.mubr.bf16.mxu0 0
    %759 = vmatmul.mubr.bf16.gmra.mrb[0].mxu0 %v330
    %v760 = vpop.f32.mrb[0].mxu0
    %v761 = vadd.f32 0.0, %v760
    %v762 = vpop.f32.mrb[0].mxu0
    %v763 = vpop.f32.mrb[0].mxu0
    %v764 = vadd.f32 0.0, %v763
    %v765 = vpop.f32.mrb[0].mxu0
    %766 = vmatprep.mubr.bf16.mxu0 0
    %767 = vmatmul.mubr.bf16.gmra.mrb[0].mxu0 %v331
    %v768 = vpop.f32.mrb[0].mxu0
    %v769 = vadd.f32 0.0, %v768
    %v770 = vpop.f32.mrb[0].mxu0
    %v771 = vpop.f32.mrb[0].mxu0
    %v772 = vadd.f32 0.0, %v771
    %v773 = vpop.f32.mrb[0].mxu0
    %774 = vmatprep.mubr.bf16.mxu0 0
    %775 = vmatmul.mubr.bf16.gmra.mrb[0].mxu0 %v332
    %v776 = vpop.f32.mrb[0].mxu0
    %v777 = vadd.f32 0.0, %v776
    %v778 = vpop.f32.mrb[0].mxu0
    %v779 = vpop.f32.mrb[0].mxu0
    %v780 = vadd.f32 0.0, %v779
    %v781 = vpop.f32.mrb[0].mxu0
    %782 = vdwg.mxu0
    %v783 = vpack.c.bf16 %v724, %v721
    %v784 = vpack.c.bf16 %v732, %v729
    %v785 = vpack.c.bf16 %v740, %v737
    %v786 = vpack.c.bf16 %v748, %v745
    %v787 = vpack.c.bf16 %v756, %v753
    %v788 = vpack.c.bf16 %v764, %v761
    %v789 = vpack.c.bf16 %v772, %v769
    %v790 = vpack.c.bf16 %v780, %v777
    %s791 = scalar_lea.vmem %s4, 64
    %v792 = vld [vmem:[%s791] sm:$0xf]
    %v793 = vld [vmem:[%s791 + $0x4] sm:$0xf]
    %v794 = vld [vmem:[%s791 + $0x8] sm:$0xf]
    %v795 = vld [vmem:[%s791 + $0xc] sm:$0xf]
    %v796 = vld [vmem:[%s791 + $0x10] sm:$0xf]
    %v797 = vld [vmem:[%s791 + $0x14] sm:$0xf]
    %v798 = vld [vmem:[%s791 + $0x18] sm:$0xf]
    %v799 = vld [vmem:[%s791 + $0x1c] sm:$0xf]
    %v800 = vld [vmem:[%s791 + $0x20] sm:$0xf]
    %v801 = vld [vmem:[%s791 + $0x24] sm:$0xf]
    %v802 = vld [vmem:[%s791 + $0x28] sm:$0xf]
    %v803 = vld [vmem:[%s791 + $0x2c] sm:$0xf]
    %v804 = vld [vmem:[%s791 + $0x30] sm:$0xf]
    %v805 = vld [vmem:[%s791 + $0x34] sm:$0xf]
    %v806 = vld [vmem:[%s791 + $0x38] sm:$0xf]
    %v807 = vld [vmem:[%s791 + $0x3c] sm:$0xf]
    %s808 = scalar_lea.vmem %s5, 1
    %v809 = vld [vmem:[%s808] sm:$0x1]
    %v811 = vlaneseq
    %v812 = vshrl.u32 %v811, 7
    %v813 = vsub.s32 0, %v812
    %v814 = vrot.slane %v809, %v813
    %v832 = vunpack.c.l.b16 %v792
    %v833 = vunpack.c.l.b16 %v793
    %v834 = vunpack.c.l.b16 %v794
    %v835 = vunpack.c.l.b16 %v795
    %v836 = vunpack.c.l.b16 %v796
    %v837 = vunpack.c.l.b16 %v797
    %v838 = vunpack.c.l.b16 %v798
    %v839 = vunpack.c.l.b16 %v799
    %v840 = vunpack.c.l.b16 %v800
    %v841 = vunpack.c.l.b16 %v801
    %v842 = vunpack.c.l.b16 %v802
    %v843 = vunpack.c.l.b16 %v803
    %v844 = vunpack.c.l.b16 %v804
    %v845 = vunpack.c.l.b16 %v805
    %v846 = vunpack.c.l.b16 %v806
    %v847 = vunpack.c.l.b16 %v807
    %v848 = vpack.c.b16 %v833, %v832
    %v849 = vpack.c.b16 %v835, %v834
    %v850 = vpack.c.b16 %v837, %v836
    %v851 = vpack.c.b16 %v839, %v838
    %v852 = vpack.c.b16 %v841, %v840
    %v853 = vpack.c.b16 %v843, %v842
    %v854 = vpack.c.b16 %v845, %v844
    %v855 = vpack.c.b16 %v847, %v846
    %864 = vmatprep.subr.bf16.mxu0 0
    %865 = vmatpush1.bf16.msra.mxu0 %v848
    %866 = vmatprep.subr.bf16.mxu0 0
    %867 = vmatpush1.bf16.msra.mxu0 %v849
    %868 = vmatprep.subr.bf16.mxu0 0
    %869 = vmatpush1.bf16.msra.mxu0 %v850
    %870 = vmatprep.subr.bf16.mxu0 0
    %871 = vmatpush1.bf16.msra.mxu0 %v851
    %872 = vmatprep.subr.bf16.mxu0 0
    %873 = vmatpush1.bf16.msra.mxu0 %v852
    %874 = vmatprep.subr.bf16.mxu0 0
    %875 = vmatpush1.bf16.msra.mxu0 %v853
    %876 = vmatprep.subr.bf16.mxu0 0
    %877 = vmatpush1.bf16.msra.mxu0 %v854
    %878 = vmatprep.subr.bf16.mxu0 0
    %879 = vmatpush1.bf16.msra.mxu0 %v855
    %880 = vmatprep.subr.bf16.mxu0 0
    %881 = vmatpush1.bf16.msra.mxu0 0
    %882 = vmatprep.subr.bf16.mxu0 0
    %883 = vmatpush1.bf16.msra.mxu0 0
    %884 = vmatprep.subr.bf16.mxu0 0
    %885 = vmatpush1.bf16.msra.mxu0 0
    %886 = vmatprep.subr.bf16.mxu0 0
    %887 = vmatpush1.bf16.msra.mxu0 0
    %888 = vmatprep.subr.bf16.mxu0 0
    %889 = vmatpush1.bf16.msra.mxu0 0
    %890 = vmatprep.subr.bf16.mxu0 0
    %891 = vmatpush1.bf16.msra.mxu0 0
    %892 = vmatprep.subr.bf16.mxu0 0
    %893 = vmatpush1.bf16.msra.mxu0 0
    %894 = vmatprep.subr.bf16.mxu0 0
    %895 = vmatpush1.bf16.msra.mxu0 0
    %896 = vmatprep.mubr.bf16.mxu0 0
    %897 = vmatmul.mubr.bf16.gmra.mrb[0].mxu0 %v783
    %v898 = vpop.f32.mrb[0].mxu0
    %v899 = vadd.f32 %v814, %v898
    %v900 = vpop.f32.mrb[0].mxu0
    %v901 = vpop.f32.mrb[0].mxu0
    %v902 = vadd.f32 %v814, %v901
    %v903 = vpop.f32.mrb[0].mxu0
    %904 = vmatprep.mubr.bf16.mxu0 0
    %905 = vmatmul.mubr.bf16.gmra.mrb[0].mxu0 %v784
    %v906 = vpop.f32.mrb[0].mxu0
    %v907 = vadd.f32 %v814, %v906
    %v908 = vpop.f32.mrb[0].mxu0
    %v909 = vpop.f32.mrb[0].mxu0
    %v910 = vadd.f32 %v814, %v909
    %v911 = vpop.f32.mrb[0].mxu0
    %912 = vmatprep.mubr.bf16.mxu0 0
    %913 = vmatmul.mubr.bf16.gmra.mrb[0].mxu0 %v785
    %v914 = vpop.f32.mrb[0].mxu0
    %v915 = vadd.f32 %v814, %v914
    %v916 = vpop.f32.mrb[0].mxu0
    %v917 = vpop.f32.mrb[0].mxu0
    %v918 = vadd.f32 %v814, %v917
    %v919 = vpop.f32.mrb[0].mxu0
    %920 = vmatprep.mubr.bf16.mxu0 0
    %921 = vmatmul.mubr.bf16.gmra.mrb[0].mxu0 %v786
    %v922 = vpop.f32.mrb[0].mxu0
    %v923 = vadd.f32 %v814, %v922
    %v924 = vpop.f32.mrb[0].mxu0
    %v925 = vpop.f32.mrb[0].mxu0
    %v926 = vadd.f32 %v814, %v925
    %v927 = vpop.f32.mrb[0].mxu0
    %928 = vmatprep.mubr.bf16.mxu0 0
    %929 = vmatmul.mubr.bf16.gmra.mrb[0].mxu0 %v787
    %v930 = vpop.f32.mrb[0].mxu0
    %v931 = vadd.f32 %v814, %v930
    %v932 = vpop.f32.mrb[0].mxu0
    %v933 = vpop.f32.mrb[0].mxu0
    %v934 = vadd.f32 %v814, %v933
    %v935 = vpop.f32.mrb[0].mxu0
    %936 = vmatprep.mubr.bf16.mxu0 0
    %937 = vmatmul.mubr.bf16.gmra.mrb[0].mxu0 %v788
    %v938 = vpop.f32.mrb[0].mxu0
    %v939 = vadd.f32 %v814, %v938
    %v940 = vpop.f32.mrb[0].mxu0
    %v941 = vpop.f32.mrb[0].mxu0
    %v942 = vadd.f32 %v814, %v941
    %v943 = vpop.f32.mrb[0].mxu0
    %944 = vmatprep.mubr.bf16.mxu0 0
    %945 = vmatmul.mubr.bf16.gmra.mrb[0].mxu0 %v789
    %v946 = vpop.f32.mrb[0].mxu0
    %v947 = vadd.f32 %v814, %v946
    %v948 = vpop.f32.mrb[0].mxu0
    %v949 = vpop.f32.mrb[0].mxu0
    %v950 = vadd.f32 %v814, %v949
    %v951 = vpop.f32.mrb[0].mxu0
    %952 = vmatprep.mubr.bf16.mxu0 0
    %953 = vmatmul.mubr.bf16.gmra.mrb[0].mxu0 %v790
    %v954 = vpop.f32.mrb[0].mxu0
    %v955 = vadd.f32 %v814, %v954
    %v956 = vpop.f32.mrb[0].mxu0
    %v957 = vpop.f32.mrb[0].mxu0
    %v958 = vadd.f32 %v814, %v957
    %v959 = vpop.f32.mrb[0].mxu0
    %960 = vdwg.mxu0
    %v961 = vmax.f32 %v899, 0.0
    %v962 = vmax.f32 %v902, 0.0
    %v963 = vmax.f32 %v907, 0.0
    %v964 = vmax.f32 %v910, 0.0
    %v965 = vmax.f32 %v915, 0.0
    %v966 = vmax.f32 %v918, 0.0
    %v967 = vmax.f32 %v923, 0.0
    %v968 = vmax.f32 %v926, 0.0
    %v969 = vmax.f32 %v931, 0.0
    %v970 = vmax.f32 %v934, 0.0
    %v971 = vmax.f32 %v939, 0.0
    %v972 = vmax.f32 %v942, 0.0
    %v973 = vmax.f32 %v947, 0.0
    %v974 = vmax.f32 %v950, 0.0
    %v975 = vmax.f32 %v955, 0.0
    %v976 = vmax.f32 %v958, 0.0
    %v977 = vunpack.c.l.bf16 %v678
    %v978 = vunpack.c.h.bf16 %v678
    %v979 = vunpack.c.l.bf16 %v679
    %v980 = vunpack.c.h.bf16 %v679
    %v981 = vunpack.c.l.bf16 %v680
    %v982 = vunpack.c.h.bf16 %v680
    %v983 = vunpack.c.l.bf16 %v681
    %v984 = vunpack.c.h.bf16 %v681
    %v985 = vunpack.c.l.bf16 %v682
    %v986 = vunpack.c.h.bf16 %v682
    %v987 = vunpack.c.l.bf16 %v683
    %v988 = vunpack.c.h.bf16 %v683
    %v989 = vunpack.c.l.bf16 %v684
    %v990 = vunpack.c.h.bf16 %v684
    %v991 = vunpack.c.l.bf16 %v685
    %v992 = vunpack.c.h.bf16 %v685
    %v993 = vadd.f32 %v977, %v961
    %v994 = vadd.f32 %v978, %v962
    %v995 = vadd.f32 %v979, %v963
    %v996 = vadd.f32 %v980, %v964
    %v997 = vadd.f32 %v981, %v965
    %v998 = vadd.f32 %v982, %v966
    %v999 = vadd.f32 %v983, %v967
    %v1000 = vadd.f32 %v984, %v968
    %v1001 = vadd.f32 %v985, %v969
    %v1002 = vadd.f32 %v986, %v970
    %v1003 = vadd.f32 %v987, %v971
    %v1004 = vadd.f32 %v988, %v972
    %v1005 = vadd.f32 %v989, %v973
    %v1006 = vadd.f32 %v990, %v974
    %v1007 = vadd.f32 %v991, %v975
    %v1008 = vadd.f32 %v992, %v976
    %v1009 = vmax.f32 %v993, 0.0
    %v1010 = vmax.f32 %v994, 0.0
    %v1011 = vmax.f32 %v995, 0.0
    %v1012 = vmax.f32 %v996, 0.0
    %v1013 = vmax.f32 %v997, 0.0
    %v1014 = vmax.f32 %v998, 0.0
    %v1015 = vmax.f32 %v999, 0.0
    %v1016 = vmax.f32 %v1000, 0.0
    %v1017 = vmax.f32 %v1001, 0.0
    %v1018 = vmax.f32 %v1002, 0.0
    %v1019 = vmax.f32 %v1003, 0.0
    %v1020 = vmax.f32 %v1004, 0.0
    %v1021 = vmax.f32 %v1005, 0.0
    %v1022 = vmax.f32 %v1006, 0.0
    %v1023 = vmax.f32 %v1007, 0.0
    %v1024 = vmax.f32 %v1008, 0.0
    %v1025 = vpack.c.bf16 %v1010, %v1009
    %v1026 = vpack.c.bf16 %v1012, %v1011
    %v1027 = vpack.c.bf16 %v1014, %v1013
    %v1028 = vpack.c.bf16 %v1016, %v1015
    %v1029 = vpack.c.bf16 %v1018, %v1017
    %v1030 = vpack.c.bf16 %v1020, %v1019
    %v1031 = vpack.c.bf16 %v1022, %v1021
    %v1032 = vpack.c.bf16 %v1024, %v1023
    %1033 = vmatprep.subr.bf16.mxu0 0
    %1034 = vmatpush1.bf16.msra.mxu0 %v1025
    %1035 = vmatprep.subr.bf16.mxu0 0
    %1036 = vmatpush1.bf16.msra.mxu0 %v1026
    %1037 = vmatprep.subr.bf16.mxu0 0
    %1038 = vmatpush1.bf16.msra.mxu0 %v1027
    %1039 = vmatprep.subr.bf16.mxu0 0
    %1040 = vmatpush1.bf16.msra.mxu0 %v1028
    %1041 = vmatprep.subr.bf16.mxu0 0
    %1042 = vmatpush1.bf16.msra.mxu0 %v1029
    %1043 = vmatprep.subr.bf16.mxu0 0
    %1044 = vmatpush1.bf16.msra.mxu0 %v1030
    %1045 = vmatprep.subr.bf16.mxu0 0
    %1046 = vmatpush1.bf16.msra.mxu0 %v1031
    %1047 = vmatprep.subr.bf16.mxu0 0
    %1048 = vmatpush1.bf16.msra.mxu0 %v1032
    %1049 = vmatprep.subr.bf16.mxu0 0
    %1050 = vmatpush1.bf16.msra.mxu0 0
    %1051 = vmatprep.subr.bf16.mxu0 0
    %1052 = vmatpush1.bf16.msra.mxu0 0
    %1053 = vmatprep.subr.bf16.mxu0 0
    %1054 = vmatpush1.bf16.msra.mxu0 0
    %1055 = vmatprep.subr.bf16.mxu0 0
    %1056 = vmatpush1.bf16.msra.mxu0 0
    %1057 = vmatprep.subr.bf16.mxu0 0
    %1058 = vmatpush1.bf16.msra.mxu0 0
    %1059 = vmatprep.subr.bf16.mxu0 0
    %1060 = vmatpush1.bf16.msra.mxu0 0
    %1061 = vmatprep.subr.bf16.mxu0 0
    %1062 = vmatpush1.bf16.msra.mxu0 0
    %1063 = vmatprep.subr.bf16.mxu0 0
    %1064 = vmatpush1.bf16.msra.mxu0 0
    %1065 = vmatprep.mubr.bf16.mxu0 0
    %1066 = vmatmul.mubr.bf16.gmra.mrb[0].mxu0 %v325
    %v1067 = vpop.f32.mrb[0].mxu0
    %v1068 = vadd.f32 0.0, %v1067
    %v1069 = vpop.f32.mrb[0].mxu0
    %v1070 = vpop.f32.mrb[0].mxu0
    %v1071 = vadd.f32 0.0, %v1070
    %v1072 = vpop.f32.mrb[0].mxu0
    %1073 = vmatprep.mubr.bf16.mxu0 0
    %1074 = vmatmul.mubr.bf16.gmra.mrb[0].mxu0 %v326
    %v1075 = vpop.f32.mrb[0].mxu0
    %v1076 = vadd.f32 0.0, %v1075
    %v1077 = vpop.f32.mrb[0].mxu0
    %v1078 = vpop.f32.mrb[0].mxu0
    %v1079 = vadd.f32 0.0, %v1078
    %v1080 = vpop.f32.mrb[0].mxu0
    %1081 = vmatprep.mubr.bf16.mxu0 0
    %1082 = vmatmul.mubr.bf16.gmra.mrb[0].mxu0 %v327
    %v1083 = vpop.f32.mrb[0].mxu0
    %v1084 = vadd.f32 0.0, %v1083
    %v1085 = vpop.f32.mrb[0].mxu0
    %v1086 = vpop.f32.mrb[0].mxu0
    %v1087 = vadd.f32 0.0, %v1086
    %v1088 = vpop.f32.mrb[0].mxu0
    %1089 = vmatprep.mubr.bf16.mxu0 0
    %1090 = vmatmul.mubr.bf16.gmra.mrb[0].mxu0 %v328
    %v1091 = vpop.f32.mrb[0].mxu0
    %v1092 = vadd.f32 0.0, %v1091
    %v1093 = vpop.f32.mrb[0].mxu0
    %v1094 = vpop.f32.mrb[0].mxu0
    %v1095 = vadd.f32 0.0, %v1094
    %v1096 = vpop.f32.mrb[0].mxu0
    %1097 = vmatprep.mubr.bf16.mxu0 0
    %1098 = vmatmul.mubr.bf16.gmra.mrb[0].mxu0 %v329
    %v1099 = vpop.f32.mrb[0].mxu0
    %v1100 = vadd.f32 0.0, %v1099
    %v1101 = vpop.f32.mrb[0].mxu0
    %v1102 = vpop.f32.mrb[0].mxu0
    %v1103 = vadd.f32 0.0, %v1102
    %v1104 = vpop.f32.mrb[0].mxu0
    %1105 = vmatprep.mubr.bf16.mxu0 0
    %1106 = vmatmul.mubr.bf16.gmra.mrb[0].mxu0 %v330
    %v1107 = vpop.f32.mrb[0].mxu0
    %v1108 = vadd.f32 0.0, %v1107
    %v1109 = vpop.f32.mrb[0].mxu0
    %v1110 = vpop.f32.mrb[0].mxu0
    %v1111 = vadd.f32 0.0, %v1110
    %v1112 = vpop.f32.mrb[0].mxu0
    %1113 = vmatprep.mubr.bf16.mxu0 0
    %1114 = vmatmul.mubr.bf16.gmra.mrb[0].mxu0 %v331
    %v1115 = vpop.f32.mrb[0].mxu0
    %v1116 = vadd.f32 0.0, %v1115
    %v1117 = vpop.f32.mrb[0].mxu0
    %v1118 = vpop.f32.mrb[0].mxu0
    %v1119 = vadd.f32 0.0, %v1118
    %v1120 = vpop.f32.mrb[0].mxu0
    %1121 = vmatprep.mubr.bf16.mxu0 0
    %1122 = vmatmul.mubr.bf16.gmra.mrb[0].mxu0 %v332
    %v1123 = vpop.f32.mrb[0].mxu0
    %v1124 = vadd.f32 0.0, %v1123
    %v1125 = vpop.f32.mrb[0].mxu0
    %v1126 = vpop.f32.mrb[0].mxu0
    %v1127 = vadd.f32 0.0, %v1126
    %v1128 = vpop.f32.mrb[0].mxu0
    %1129 = vdwg.mxu0
    %v1130 = vpack.c.bf16 %v1071, %v1068
    %v1131 = vpack.c.bf16 %v1079, %v1076
    %v1132 = vpack.c.bf16 %v1087, %v1084
    %v1133 = vpack.c.bf16 %v1095, %v1092
    %v1134 = vpack.c.bf16 %v1103, %v1100
    %v1135 = vpack.c.bf16 %v1111, %v1108
    %v1136 = vpack.c.bf16 %v1119, %v1116
    %v1137 = vpack.c.bf16 %v1127, %v1124
    %s1138 = scalar_lea.vmem %s4, 128
    %v1139 = vld [vmem:[%s1138] sm:$0xf]
    %v1140 = vld [vmem:[%s1138 + $0x4] sm:$0xf]
    %v1141 = vld [vmem:[%s1138 + $0x8] sm:$0xf]
    %v1142 = vld [vmem:[%s1138 + $0xc] sm:$0xf]
    %v1143 = vld [vmem:[%s1138 + $0x10] sm:$0xf]
    %v1144 = vld [vmem:[%s1138 + $0x14] sm:$0xf]
    %v1145 = vld [vmem:[%s1138 + $0x18] sm:$0xf]
    %v1146 = vld [vmem:[%s1138 + $0x1c] sm:$0xf]
    %v1147 = vld [vmem:[%s1138 + $0x20] sm:$0xf]
    %v1148 = vld [vmem:[%s1138 + $0x24] sm:$0xf]
    %v1149 = vld [vmem:[%s1138 + $0x28] sm:$0xf]
    %v1150 = vld [vmem:[%s1138 + $0x2c] sm:$0xf]
    %v1151 = vld [vmem:[%s1138 + $0x30] sm:$0xf]
    %v1152 = vld [vmem:[%s1138 + $0x34] sm:$0xf]
    %v1153 = vld [vmem:[%s1138 + $0x38] sm:$0xf]
    %v1154 = vld [vmem:[%s1138 + $0x3c] sm:$0xf]
    %s1155 = scalar_lea.vmem %s5, 2
    %v1156 = vld [vmem:[%s1155] sm:$0x1]
    %v1158 = vlaneseq
    %v1159 = vshrl.u32 %v1158, 7
    %v1160 = vsub.s32 0, %v1159
    %v1161 = vrot.slane %v1156, %v1160
    %v1179 = vunpack.c.l.b16 %v1139
    %v1180 = vunpack.c.l.b16 %v1140
    %v1181 = vunpack.c.l.b16 %v1141
    %v1182 = vunpack.c.l.b16 %v1142
    %v1183 = vunpack.c.l.b16 %v1143
    %v1184 = vunpack.c.l.b16 %v1144
    %v1185 = vunpack.c.l.b16 %v1145
    %v1186 = vunpack.c.l.b16 %v1146
    %v1187 = vunpack.c.l.b16 %v1147
    %v1188 = vunpack.c.l.b16 %v1148
    %v1189 = vunpack.c.l.b16 %v1149
    %v1190 = vunpack.c.l.b16 %v1150
    %v1191 = vunpack.c.l.b16 %v1151
    %v1192 = vunpack.c.l.b16 %v1152
    %v1193 = vunpack.c.l.b16 %v1153
    %v1194 = vunpack.c.l.b16 %v1154
    %v1195 = vpack.c.b16 %v1180, %v1179
    %v1196 = vpack.c.b16 %v1182, %v1181
    %v1197 = vpack.c.b16 %v1184, %v1183
    %v1198 = vpack.c.b16 %v1186, %v1185
    %v1199 = vpack.c.b16 %v1188, %v1187
    %v1200 = vpack.c.b16 %v1190, %v1189
    %v1201 = vpack.c.b16 %v1192, %v1191
    %v1202 = vpack.c.b16 %v1194, %v1193
    %1211 = vmatprep.subr.bf16.mxu0 0
    %1212 = vmatpush1.bf16.msra.mxu0 %v1195
    %1213 = vmatprep.subr.bf16.mxu0 0
    %1214 = vmatpush1.bf16.msra.mxu0 %v1196
    %1215 = vmatprep.subr.bf16.mxu0 0
    %1216 = vmatpush1.bf16.msra.mxu0 %v1197
    %1217 = vmatprep.subr.bf16.mxu0 0
    %1218 = vmatpush1.bf16.msra.mxu0 %v1198
    %1219 = vmatprep.subr.bf16.mxu0 0
    %1220 = vmatpush1.bf16.msra.mxu0 %v1199
    %1221 = vmatprep.subr.bf16.mxu0 0
    %1222 = vmatpush1.bf16.msra.mxu0 %v1200
    %1223 = vmatprep.subr.bf16.mxu0 0
    %1224 = vmatpush1.bf16.msra.mxu0 %v1201
    %1225 = vmatprep.subr.bf16.mxu0 0
    %1226 = vmatpush1.bf16.msra.mxu0 %v1202
    %1227 = vmatprep.subr.bf16.mxu0 0
    %1228 = vmatpush1.bf16.msra.mxu0 0
    %1229 = vmatprep.subr.bf16.mxu0 0
    %1230 = vmatpush1.bf16.msra.mxu0 0
    %1231 = vmatprep.subr.bf16.mxu0 0
    %1232 = vmatpush1.bf16.msra.mxu0 0
    %1233 = vmatprep.subr.bf16.mxu0 0
    %1234 = vmatpush1.bf16.msra.mxu0 0
    %1235 = vmatprep.subr.bf16.mxu0 0
    %1236 = vmatpush1.bf16.msra.mxu0 0
    %1237 = vmatprep.subr.bf16.mxu0 0
    %1238 = vmatpush1.bf16.msra.mxu0 0
    %1239 = vmatprep.subr.bf16.mxu0 0
    %1240 = vmatpush1.bf16.msra.mxu0 0
    %1241 = vmatprep.subr.bf16.mxu0 0
    %1242 = vmatpush1.bf16.msra.mxu0 0
    %1243 = vmatprep.mubr.bf16.mxu0 0
    %1244 = vmatmul.mubr.bf16.gmra.mrb[0].mxu0 %v1130
    %v1245 = vpop.f32.mrb[0].mxu0
    %v1246 = vadd.f32 %v1161, %v1245
    %v1247 = vpop.f32.mrb[0].mxu0
    %v1248 = vpop.f32.mrb[0].mxu0
    %v1249 = vadd.f32 %v1161, %v1248
    %v1250 = vpop.f32.mrb[0].mxu0
    %1251 = vmatprep.mubr.bf16.mxu0 0
    %1252 = vmatmul.mubr.bf16.gmra.mrb[0].mxu0 %v1131
    %v1253 = vpop.f32.mrb[0].mxu0
    %v1254 = vadd.f32 %v1161, %v1253
    %v1255 = vpop.f32.mrb[0].mxu0
    %v1256 = vpop.f32.mrb[0].mxu0
    %v1257 = vadd.f32 %v1161, %v1256
    %v1258 = vpop.f32.mrb[0].mxu0
    %1259 = vmatprep.mubr.bf16.mxu0 0
    %1260 = vmatmul.mubr.bf16.gmra.mrb[0].mxu0 %v1132
    %v1261 = vpop.f32.mrb[0].mxu0
    %v1262 = vadd.f32 %v1161, %v1261
    %v1263 = vpop.f32.mrb[0].mxu0
    %v1264 = vpop.f32.mrb[0].mxu0
    %v1265 = vadd.f32 %v1161, %v1264
    %v1266 = vpop.f32.mrb[0].mxu0
    %1267 = vmatprep.mubr.bf16.mxu0 0
    %1268 = vmatmul.mubr.bf16.gmra.mrb[0].mxu0 %v1133
    %v1269 = vpop.f32.mrb[0].mxu0
    %v1270 = vadd.f32 %v1161, %v1269
    %v1271 = vpop.f32.mrb[0].mxu0
    %v1272 = vpop.f32.mrb[0].mxu0
    %v1273 = vadd.f32 %v1161, %v1272
    %v1274 = vpop.f32.mrb[0].mxu0
    %1275 = vmatprep.mubr.bf16.mxu0 0
    %1276 = vmatmul.mubr.bf16.gmra.mrb[0].mxu0 %v1134
    %v1277 = vpop.f32.mrb[0].mxu0
    %v1278 = vadd.f32 %v1161, %v1277
    %v1279 = vpop.f32.mrb[0].mxu0
    %v1280 = vpop.f32.mrb[0].mxu0
    %v1281 = vadd.f32 %v1161, %v1280
    %v1282 = vpop.f32.mrb[0].mxu0
    %1283 = vmatprep.mubr.bf16.mxu0 0
    %1284 = vmatmul.mubr.bf16.gmra.mrb[0].mxu0 %v1135
    %v1285 = vpop.f32.mrb[0].mxu0
    %v1286 = vadd.f32 %v1161, %v1285
    %v1287 = vpop.f32.mrb[0].mxu0
    %v1288 = vpop.f32.mrb[0].mxu0
    %v1289 = vadd.f32 %v1161, %v1288
    %v1290 = vpop.f32.mrb[0].mxu0
    %1291 = vmatprep.mubr.bf16.mxu0 0
    %1292 = vmatmul.mubr.bf16.gmra.mrb[0].mxu0 %v1136
    %v1293 = vpop.f32.mrb[0].mxu0
    %v1294 = vadd.f32 %v1161, %v1293
    %v1295 = vpop.f32.mrb[0].mxu0
    %v1296 = vpop.f32.mrb[0].mxu0
    %v1297 = vadd.f32 %v1161, %v1296
    %v1298 = vpop.f32.mrb[0].mxu0
    %1299 = vmatprep.mubr.bf16.mxu0 0
    %1300 = vmatmul.mubr.bf16.gmra.mrb[0].mxu0 %v1137
    %v1301 = vpop.f32.mrb[0].mxu0
    %v1302 = vadd.f32 %v1161, %v1301
    %v1303 = vpop.f32.mrb[0].mxu0
    %v1304 = vpop.f32.mrb[0].mxu0
    %v1305 = vadd.f32 %v1161, %v1304
    %v1306 = vpop.f32.mrb[0].mxu0
    %1307 = vdwg.mxu0
    %v1308 = vunpack.c.l.bf16 %v1025
    %v1309 = vunpack.c.h.bf16 %v1025
    %v1310 = vunpack.c.l.bf16 %v1026
    %v1311 = vunpack.c.h.bf16 %v1026
    %v1312 = vunpack.c.l.bf16 %v1027
    %v1313 = vunpack.c.h.bf16 %v1027
    %v1314 = vunpack.c.l.bf16 %v1028
    %v1315 = vunpack.c.h.bf16 %v1028
    %v1316 = vunpack.c.l.bf16 %v1029
    %v1317 = vunpack.c.h.bf16 %v1029
    %v1318 = vunpack.c.l.bf16 %v1030
    %v1319 = vunpack.c.h.bf16 %v1030
    %v1320 = vunpack.c.l.bf16 %v1031
    %v1321 = vunpack.c.h.bf16 %v1031
    %v1322 = vunpack.c.l.bf16 %v1032
    %v1323 = vunpack.c.h.bf16 %v1032
    %v1324 = vadd.f32 %v1308, %v1246
    %v1325 = vadd.f32 %v1309, %v1249
    %v1326 = vadd.f32 %v1310, %v1254
    %v1327 = vadd.f32 %v1311, %v1257
    %v1328 = vadd.f32 %v1312, %v1262
    %v1329 = vadd.f32 %v1313, %v1265
    %v1330 = vadd.f32 %v1314, %v1270
    %v1331 = vadd.f32 %v1315, %v1273
    %v1332 = vadd.f32 %v1316, %v1278
    %v1333 = vadd.f32 %v1317, %v1281
    %v1334 = vadd.f32 %v1318, %v1286
    %v1335 = vadd.f32 %v1319, %v1289
    %v1336 = vadd.f32 %v1320, %v1294
    %v1337 = vadd.f32 %v1321, %v1297
    %v1338 = vadd.f32 %v1322, %v1302
    %v1339 = vadd.f32 %v1323, %v1305
    %v1340 = vmax.f32 %v1324, 0.0
    %v1341 = vmax.f32 %v1325, 0.0
    %v1342 = vmax.f32 %v1326, 0.0
    %v1343 = vmax.f32 %v1327, 0.0
    %v1344 = vmax.f32 %v1328, 0.0
    %v1345 = vmax.f32 %v1329, 0.0
    %v1346 = vmax.f32 %v1330, 0.0
    %v1347 = vmax.f32 %v1331, 0.0
    %v1348 = vmax.f32 %v1332, 0.0
    %v1349 = vmax.f32 %v1333, 0.0
    %v1350 = vmax.f32 %v1334, 0.0
    %v1351 = vmax.f32 %v1335, 0.0
    %v1352 = vmax.f32 %v1336, 0.0
    %v1353 = vmax.f32 %v1337, 0.0
    %v1354 = vmax.f32 %v1338, 0.0
    %v1355 = vmax.f32 %v1339, 0.0
    %v1356 = vpack.c.bf16 %v1341, %v1340
    %v1357 = vpack.c.bf16 %v1343, %v1342
    %v1358 = vpack.c.bf16 %v1345, %v1344
    %v1359 = vpack.c.bf16 %v1347, %v1346
    %v1360 = vpack.c.bf16 %v1349, %v1348
    %v1361 = vpack.c.bf16 %v1351, %v1350
    %v1362 = vpack.c.bf16 %v1353, %v1352
    %v1363 = vpack.c.bf16 %v1355, %v1354
    %v1364 = vunpack.c.l.bf16 %v1356
    %v1365 = vunpack.c.h.bf16 %v1356
    %v1366 = vunpack.c.l.bf16 %v1357
    %v1367 = vunpack.c.h.bf16 %v1357
    %v1368 = vunpack.c.l.bf16 %v1358
    %v1369 = vunpack.c.h.bf16 %v1358
    %v1370 = vunpack.c.l.bf16 %v1359
    %v1371 = vunpack.c.h.bf16 %v1359
    %v1372 = vunpack.c.l.bf16 %v1360
    %v1373 = vunpack.c.h.bf16 %v1360
    %v1374 = vunpack.c.l.bf16 %v1361
    %v1375 = vunpack.c.h.bf16 %v1361
    %v1376 = vunpack.c.l.bf16 %v1362
    %v1377 = vunpack.c.h.bf16 %v1362
    %v1378 = vunpack.c.l.bf16 %v1363
    %v1379 = vunpack.c.h.bf16 %v1363
    %v1380 = vadd.f32 %v1364, %v1365
    %v1381 = vadd.f32 %v1380, %v1366
    %v1382 = vadd.f32 %v1381, %v1367
    %v1383 = vadd.f32 %v1382, %v1368
    %v1384 = vadd.f32 %v1383, %v1369
    %v1385 = vadd.f32 %v1384, %v1370
    %v1386 = vadd.f32 %v1385, %v1371
    %v1387 = vadd.f32 %v1386, %v1372
    %v1388 = vadd.f32 %v1387, %v1373
    %v1389 = vadd.f32 %v1388, %v1374
    %v1390 = vadd.f32 %v1389, %v1375
    %v1391 = vadd.f32 %v1390, %v1376
    %v1392 = vadd.f32 %v1391, %v1377
    %v1393 = vadd.f32 %v1392, %v1378
    %v1394 = vadd.f32 %v1393, %v1379
    %v1395 = vrot.slane %v1394, 4
    %v1396 = vadd.f32 %v1394, %v1395
    %v1397 = vrot.slane %v1396, 2
    %v1398 = vadd.f32 %v1396, %v1397
    %v1399 = vrot.slane %v1398, 1
    %v1400 = vadd.f32 %v1398, %v1399
    %v1401 = vpack.c.bf16 %v1400, %v1400
    %v1402 = vld [vmem:[%s6] sm:$0xf]
    %v1403 = vld [vmem:[%s6 + $0x4] sm:$0xf]
    %v1404 = vld [vmem:[%s6 + $0x8] sm:$0xf]
    %v1405 = vld [vmem:[%s6 + $0xc] sm:$0xf]
    %v1406 = vld [vmem:[%s6 + $0x10] sm:$0xf]
    %v1407 = vld [vmem:[%s6 + $0x14] sm:$0xf]
    %v1408 = vld [vmem:[%s6 + $0x18] sm:$0xf]
    %v1409 = vld [vmem:[%s6 + $0x1c] sm:$0xf]
    %v1410 = vld [vmem:[%s6 + $0x20] sm:$0xf]
    %v1411 = vld [vmem:[%s6 + $0x24] sm:$0xf]
    %v1412 = vld [vmem:[%s6 + $0x28] sm:$0xf]
    %v1413 = vld [vmem:[%s6 + $0x2c] sm:$0xf]
    %v1414 = vld [vmem:[%s6 + $0x30] sm:$0xf]
    %v1415 = vld [vmem:[%s6 + $0x34] sm:$0xf]
    %v1416 = vld [vmem:[%s6 + $0x38] sm:$0xf]
    %v1417 = vld [vmem:[%s6 + $0x3c] sm:$0xf]
    %v1418 = vld [vmem:[%s7] sm:$0x1]
    %v1435 = vunpack.c.l.b16 %v1402
    %v1436 = vunpack.c.l.b16 %v1403
    %v1437 = vunpack.c.l.b16 %v1404
    %v1438 = vunpack.c.l.b16 %v1405
    %v1439 = vunpack.c.l.b16 %v1406
    %v1440 = vunpack.c.l.b16 %v1407
    %v1441 = vunpack.c.l.b16 %v1408
    %v1442 = vunpack.c.l.b16 %v1409
    %v1443 = vunpack.c.l.b16 %v1410
    %v1444 = vunpack.c.l.b16 %v1411
    %v1445 = vunpack.c.l.b16 %v1412
    %v1446 = vunpack.c.l.b16 %v1413
    %v1447 = vunpack.c.l.b16 %v1414
    %v1448 = vunpack.c.l.b16 %v1415
    %v1449 = vunpack.c.l.b16 %v1416
    %v1450 = vunpack.c.l.b16 %v1417
    %v1451 = vpack.c.b16 %v1436, %v1435
    %v1452 = vpack.c.b16 %v1438, %v1437
    %v1453 = vpack.c.b16 %v1440, %v1439
    %v1454 = vpack.c.b16 %v1442, %v1441
    %v1455 = vpack.c.b16 %v1444, %v1443
    %v1456 = vpack.c.b16 %v1446, %v1445
    %v1457 = vpack.c.b16 %v1448, %v1447
    %v1458 = vpack.c.b16 %v1450, %v1449
    %1467 = vmatprep.subr.bf16.mxu0 0
    %1468 = vmatpush1.bf16.msra.mxu0 %v1451
    %1469 = vmatprep.subr.bf16.mxu0 0
    %1470 = vmatpush1.bf16.msra.mxu0 %v1452
    %1471 = vmatprep.subr.bf16.mxu0 0
    %1472 = vmatpush1.bf16.msra.mxu0 %v1453
    %1473 = vmatprep.subr.bf16.mxu0 0
    %1474 = vmatpush1.bf16.msra.mxu0 %v1454
    %1475 = vmatprep.subr.bf16.mxu0 0
    %1476 = vmatpush1.bf16.msra.mxu0 %v1455
    %1477 = vmatprep.subr.bf16.mxu0 0
    %1478 = vmatpush1.bf16.msra.mxu0 %v1456
    %1479 = vmatprep.subr.bf16.mxu0 0
    %1480 = vmatpush1.bf16.msra.mxu0 %v1457
    %1481 = vmatprep.subr.bf16.mxu0 0
    %1482 = vmatpush1.bf16.msra.mxu0 %v1458
    %1483 = vmatprep.subr.bf16.mxu0 0
    %1484 = vmatpush1.bf16.msra.mxu0 0
    %1485 = vmatprep.subr.bf16.mxu0 0
    %1486 = vmatpush1.bf16.msra.mxu0 0
    %1487 = vmatprep.subr.bf16.mxu0 0
    %1488 = vmatpush1.bf16.msra.mxu0 0
    %1489 = vmatprep.subr.bf16.mxu0 0
    %1490 = vmatpush1.bf16.msra.mxu0 0
    %1491 = vmatprep.subr.bf16.mxu0 0
    %1492 = vmatpush1.bf16.msra.mxu0 0
    %1493 = vmatprep.subr.bf16.mxu0 0
    %1494 = vmatpush1.bf16.msra.mxu0 0
    %1495 = vmatprep.subr.bf16.mxu0 0
    %1496 = vmatpush1.bf16.msra.mxu0 0
    %1497 = vmatprep.subr.bf16.mxu0 0
    %1498 = vmatpush1.bf16.msra.mxu0 0
    %1499 = vmatprep.mubr.bf16.mxu0 0
    %1500 = vmatmul.mubr.bf16.gmra.mrb[0].mxu0 %v1401
    %v1501 = vpop.f32.mrb[0].mxu0
    %v1502 = vadd.f32 %v1418, %v1501
    %v1503 = vpop.f32.mrb[0].mxu0
    %v1504 = vpop.f32.mrb[0].mxu0
    %v1505 = vpop.f32.mrb[0].mxu0
    %1506 = vdwg.mxu0
    %v1507 = vmax.f32 %v1502, 0.0
    %v1508 = vpack.c.bf16 %v1507, %v1507
    %v1509 = vld [vmem:[%s8] sm:$0xf]
    %v1510 = vld [vmem:[%s8 + $0x4] sm:$0xf]
    %v1511 = vld [vmem:[%s8 + $0x8] sm:$0xf]
    %v1512 = vld [vmem:[%s8 + $0xc] sm:$0xf]
    %v1513 = vld [vmem:[%s8 + $0x10] sm:$0xf]
    %v1514 = vld [vmem:[%s8 + $0x14] sm:$0xf]
    %v1515 = vld [vmem:[%s8 + $0x18] sm:$0xf]
    %v1516 = vld [vmem:[%s8 + $0x1c] sm:$0xf]
    %v1517 = vld [vmem:[%s8 + $0x20] sm:$0xf]
    %v1518 = vld [vmem:[%s8 + $0x24] sm:$0xf]
    %v1519 = vld [vmem:[%s8 + $0x28] sm:$0xf]
    %v1520 = vld [vmem:[%s8 + $0x2c] sm:$0xf]
    %v1521 = vld [vmem:[%s8 + $0x30] sm:$0xf]
    %v1522 = vld [vmem:[%s8 + $0x34] sm:$0xf]
    %v1523 = vld [vmem:[%s8 + $0x38] sm:$0xf]
    %v1524 = vld [vmem:[%s8 + $0x3c] sm:$0xf]
    %v1525 = vld [vmem:[%s9] sm:$0x1]
    %v1542 = vunpack.c.l.b16 %v1509
    %v1543 = vunpack.c.l.b16 %v1510
    %v1544 = vunpack.c.l.b16 %v1511
    %v1545 = vunpack.c.l.b16 %v1512
    %v1546 = vunpack.c.l.b16 %v1513
    %v1547 = vunpack.c.l.b16 %v1514
    %v1548 = vunpack.c.l.b16 %v1515
    %v1549 = vunpack.c.l.b16 %v1516
    %v1550 = vunpack.c.l.b16 %v1517
    %v1551 = vunpack.c.l.b16 %v1518
    %v1552 = vunpack.c.l.b16 %v1519
    %v1553 = vunpack.c.l.b16 %v1520
    %v1554 = vunpack.c.l.b16 %v1521
    %v1555 = vunpack.c.l.b16 %v1522
    %v1556 = vunpack.c.l.b16 %v1523
    %v1557 = vunpack.c.l.b16 %v1524
    %v1558 = vpack.c.b16 %v1543, %v1542
    %v1559 = vpack.c.b16 %v1545, %v1544
    %v1560 = vpack.c.b16 %v1547, %v1546
    %v1561 = vpack.c.b16 %v1549, %v1548
    %v1562 = vpack.c.b16 %v1551, %v1550
    %v1563 = vpack.c.b16 %v1553, %v1552
    %v1564 = vpack.c.b16 %v1555, %v1554
    %v1565 = vpack.c.b16 %v1557, %v1556
    %1574 = vmatprep.subr.bf16.mxu0 0
    %1575 = vmatpush1.bf16.msra.mxu0 %v1558
    %1576 = vmatprep.subr.bf16.mxu0 0
    %1577 = vmatpush1.bf16.msra.mxu0 %v1559
    %1578 = vmatprep.subr.bf16.mxu0 0
    %1579 = vmatpush1.bf16.msra.mxu0 %v1560
    %1580 = vmatprep.subr.bf16.mxu0 0
    %1581 = vmatpush1.bf16.msra.mxu0 %v1561
    %1582 = vmatprep.subr.bf16.mxu0 0
    %1583 = vmatpush1.bf16.msra.mxu0 %v1562
    %1584 = vmatprep.subr.bf16.mxu0 0
    %1585 = vmatpush1.bf16.msra.mxu0 %v1563
    %1586 = vmatprep.subr.bf16.mxu0 0
    %1587 = vmatpush1.bf16.msra.mxu0 %v1564
    %1588 = vmatprep.subr.bf16.mxu0 0
    %1589 = vmatpush1.bf16.msra.mxu0 %v1565
    %1590 = vmatprep.subr.bf16.mxu0 0
    %1591 = vmatpush1.bf16.msra.mxu0 0
    %1592 = vmatprep.subr.bf16.mxu0 0
    %1593 = vmatpush1.bf16.msra.mxu0 0
    %1594 = vmatprep.subr.bf16.mxu0 0
    %1595 = vmatpush1.bf16.msra.mxu0 0
    %1596 = vmatprep.subr.bf16.mxu0 0
    %1597 = vmatpush1.bf16.msra.mxu0 0
    %1598 = vmatprep.subr.bf16.mxu0 0
    %1599 = vmatpush1.bf16.msra.mxu0 0
    %1600 = vmatprep.subr.bf16.mxu0 0
    %1601 = vmatpush1.bf16.msra.mxu0 0
    %1602 = vmatprep.subr.bf16.mxu0 0
    %1603 = vmatpush1.bf16.msra.mxu0 0
    %1604 = vmatprep.subr.bf16.mxu0 0
    %1605 = vmatpush1.bf16.msra.mxu0 0
    %1606 = vmatprep.mubr.bf16.mxu0 0
    %1607 = vmatmul.mubr.bf16.gmra.mrb[0].mxu0 %v1508
    %v1608 = vpop.f32.mrb[0].mxu0
    %v1609 = vadd.f32 %v1525, %v1608
    %v1610 = vpop.f32.mrb[0].mxu0
    %v1611 = vpop.f32.mrb[0].mxu0
    %v1612 = vpop.f32.mrb[0].mxu0
    %1613 = vdwg.mxu0
    %v1614 = vmax.f32 %v1609, 0.0
    %v1615 = vpack.c.bf16 %v1614, %v1614
    %s1616 = scalar_lea.vmem %s8, 64
    %v1617 = vld [vmem:[%s1616] sm:$0xf]
    %v1618 = vld [vmem:[%s1616 + $0x4] sm:$0xf]
    %v1619 = vld [vmem:[%s1616 + $0x8] sm:$0xf]
    %v1620 = vld [vmem:[%s1616 + $0xc] sm:$0xf]
    %v1621 = vld [vmem:[%s1616 + $0x10] sm:$0xf]
    %v1622 = vld [vmem:[%s1616 + $0x14] sm:$0xf]
    %v1623 = vld [vmem:[%s1616 + $0x18] sm:$0xf]
    %v1624 = vld [vmem:[%s1616 + $0x1c] sm:$0xf]
    %v1625 = vld [vmem:[%s1616 + $0x20] sm:$0xf]
    %v1626 = vld [vmem:[%s1616 + $0x24] sm:$0xf]
    %v1627 = vld [vmem:[%s1616 + $0x28] sm:$0xf]
    %v1628 = vld [vmem:[%s1616 + $0x2c] sm:$0xf]
    %v1629 = vld [vmem:[%s1616 + $0x30] sm:$0xf]
    %v1630 = vld [vmem:[%s1616 + $0x34] sm:$0xf]
    %v1631 = vld [vmem:[%s1616 + $0x38] sm:$0xf]
    %v1632 = vld [vmem:[%s1616 + $0x3c] sm:$0xf]
    %s1633 = scalar_lea.vmem %s9, 1
    %v1634 = vld [vmem:[%s1633] sm:$0x1]
    %v1651 = vunpack.c.l.b16 %v1617
    %v1652 = vunpack.c.l.b16 %v1618
    %v1653 = vunpack.c.l.b16 %v1619
    %v1654 = vunpack.c.l.b16 %v1620
    %v1655 = vunpack.c.l.b16 %v1621
    %v1656 = vunpack.c.l.b16 %v1622
    %v1657 = vunpack.c.l.b16 %v1623
    %v1658 = vunpack.c.l.b16 %v1624
    %v1659 = vunpack.c.l.b16 %v1625
    %v1660 = vunpack.c.l.b16 %v1626
    %v1661 = vunpack.c.l.b16 %v1627
    %v1662 = vunpack.c.l.b16 %v1628
    %v1663 = vunpack.c.l.b16 %v1629
    %v1664 = vunpack.c.l.b16 %v1630
    %v1665 = vunpack.c.l.b16 %v1631
    %v1666 = vunpack.c.l.b16 %v1632
    %v1667 = vpack.c.b16 %v1652, %v1651
    %v1668 = vpack.c.b16 %v1654, %v1653
    %v1669 = vpack.c.b16 %v1656, %v1655
    %v1670 = vpack.c.b16 %v1658, %v1657
    %v1671 = vpack.c.b16 %v1660, %v1659
    %v1672 = vpack.c.b16 %v1662, %v1661
    %v1673 = vpack.c.b16 %v1664, %v1663
    %v1674 = vpack.c.b16 %v1666, %v1665
    %1683 = vmatprep.subr.bf16.mxu0 0
    %1684 = vmatpush1.bf16.msra.mxu0 %v1667
    %1685 = vmatprep.subr.bf16.mxu0 0
    %1686 = vmatpush1.bf16.msra.mxu0 %v1668
    %1687 = vmatprep.subr.bf16.mxu0 0
    %1688 = vmatpush1.bf16.msra.mxu0 %v1669
    %1689 = vmatprep.subr.bf16.mxu0 0
    %1690 = vmatpush1.bf16.msra.mxu0 %v1670
    %1691 = vmatprep.subr.bf16.mxu0 0
    %1692 = vmatpush1.bf16.msra.mxu0 %v1671
    %1693 = vmatprep.subr.bf16.mxu0 0
    %1694 = vmatpush1.bf16.msra.mxu0 %v1672
    %1695 = vmatprep.subr.bf16.mxu0 0
    %1696 = vmatpush1.bf16.msra.mxu0 %v1673
    %1697 = vmatprep.subr.bf16.mxu0 0
    %1698 = vmatpush1.bf16.msra.mxu0 %v1674
    %1699 = vmatprep.subr.bf16.mxu0 0
    %1700 = vmatpush1.bf16.msra.mxu0 0
    %1701 = vmatprep.subr.bf16.mxu0 0
    %1702 = vmatpush1.bf16.msra.mxu0 0
    %1703 = vmatprep.subr.bf16.mxu0 0
    %1704 = vmatpush1.bf16.msra.mxu0 0
    %1705 = vmatprep.subr.bf16.mxu0 0
    %1706 = vmatpush1.bf16.msra.mxu0 0
    %1707 = vmatprep.subr.bf16.mxu0 0
    %1708 = vmatpush1.bf16.msra.mxu0 0
    %1709 = vmatprep.subr.bf16.mxu0 0
    %1710 = vmatpush1.bf16.msra.mxu0 0
    %1711 = vmatprep.subr.bf16.mxu0 0
    %1712 = vmatpush1.bf16.msra.mxu0 0
    %1713 = vmatprep.subr.bf16.mxu0 0
    %1714 = vmatpush1.bf16.msra.mxu0 0
    %1715 = vmatprep.mubr.bf16.mxu0 0
    %1716 = vmatmul.mubr.bf16.gmra.mrb[0].mxu0 %v1615
    %v1717 = vpop.f32.mrb[0].mxu0
    %v1718 = vadd.f32 %v1634, %v1717
    %v1719 = vpop.f32.mrb[0].mxu0
    %v1720 = vpop.f32.mrb[0].mxu0
    %v1721 = vpop.f32.mrb[0].mxu0
    %1722 = vdwg.mxu0
    %1723 = vst [vmem:[#allocation2] sm:$0x1] %v1718
    // Predicated region
    $region42: #{gcn_forward.1} parent=1 // pred_check
      _
    $region43: #{gcn_forward.1} parent=1 // pred_check_branch
      %1725 = sbr.rel (0) target = $region45
    $region44: #{gcn_forward.1} parent=1 // pred_region
      %s1727 = ssub.s32 16, 16
      %1728 = vsyncadd [#allocation3], %s1727
      %s1730 = sshll.u32 [#allocation2], 4
      %s1731 = int_to_ptr.vmem [resolvable:$true] %s1730
      %1733 = dma.vmem_to_hbm [thread:$0]  %s1731, 16, %s10, [#allocation3]
    $region45: #{gcn_forward.1} parent=1 // pred_fallthru
      _
    // Predicated region
    $region46: #{gcn_forward.1} parent=1 // pred_check
      _
    $region47: #{gcn_forward.1} parent=1 // pred_check_branch
      %1735 = sbr.rel (0) target = $region49
    $region48: #{gcn_forward.1} parent=1 // pred_region
      %1736 = dma.done [#allocation3], 16
    $region49: #{gcn_forward.1} parent=1 // pred_fallthru
      _
    %1737 = vsyncpa [#allocation3], 1

</llo_original>
